<compile_context>
chip_gen: v7x
topology: tpu7x:2x2x1
jax: 0.10.0
libtpu: 0.0.40
codegen_flags: <defaults>
</compile_context>

<pallas_src>
import numpy as np
import jax
import jax.numpy as jnp
from jax.experimental import pallas as pl
from jax.experimental.pallas import tpu as pltpu


# ----------------------------------------------------------------------------
# Host-side parameter packing (done once, cached in the module)
# ----------------------------------------------------------------------------
def _banded_conv_weights(w_hwio, width):
    """Fold the 3x3 im2col into a banded weight (3, (W+2)*cin, W*cout) so each
    conv layer becomes 3 fat, lane-dense MXU matmuls on (H, (W+2)*cin) slabs."""
    kh, kw, cin, cout = w_hwio.shape
    w_np = np.asarray(w_hwio, np.float32)
    banded = np.zeros((kh, (width + 2) * cin, width * cout), np.float32)
    for dy in range(kh):
        for dx in range(kw):
            for col in range(width):
                p = col + dx                     # padded-pixel index feeding col
                banded[dy, p * cin:(p + 1) * cin,
                       col * cout:(col + 1) * cout] = w_np[dy, dx]
    return jnp.asarray(banded, jnp.bfloat16)     # bf16 MXU operands (review)


def _pool_selectors(width, cout):
    """0/1 matrices selecting even / odd column groups: (2, W*cout, (W/2)*cout).
    Used so MaxPool's column pairing is two exact f32 matmuls + one max, giving
    a single lane-dense pooled store instead of W/2 tiny masked stores."""
    wh = width // 2
    sel = np.zeros((2, width * cout, wh * cout), np.float32)
    for k in range(wh):
        for c in range(cout):
            sel[0, (2 * k) * cout + c, k * cout + c] = 1.0
            sel[1, (2 * k + 1) * cout + c, k * cout + c] = 1.0
    return jnp.asarray(sel)


# ----------------------------------------------------------------------------
# Fused kernel factory
# ----------------------------------------------------------------------------
def _make_encoder_kernel(L, H, W, Cin, Cout):
    Hh = H // 2
    cins = [Cin] + [Cout] * (L - 1)              # per-layer input channels

    def kernel(*refs):
        # refs = x, (w_0, b_0, ..., w_{L-1}, b_{L-1}), sel, pre, pool, bufA, bufB
        x_ref = refs[0]
        w_refs = [refs[1 + 2 * l] for l in range(L)]   # (3, (W+2)*cin, W*Cout) bf16
        b_refs = [refs[2 + 2 * l] for l in range(L)]   # (1, W*Cout) f32
        sel_ref = refs[1 + 2 * L]                      # (2, W*Cout, (W/2)*Cout) f32
        pre_ref, pool_ref, buf_a, buf_b = refs[2 + 2 * L:]
        bufs = (buf_a, buf_b)

        def stage(buf, cin, interior):
            # Zero ONLY the 1-pixel halo ring (not the whole buffer); the
            # interior is fully overwritten. Re-done at every (re)stage so
            # per-core scratch under "parallel" never reads stale/garbage data.
            lanes = buf.shape[1]
            buf[0:1, :] = jnp.zeros((1, lanes), buf.dtype)
            buf[H + 1:H + 2, :] = jnp.zeros((1, lanes), buf.dtype)
            buf[:, 0:cin] = jnp.zeros((H + 2, cin), buf.dtype)
            buf[:, (W + 1) * cin:(W + 2) * cin] = jnp.zeros((H + 2, cin), buf.dtype)
            # Lane-dense interior write: rows 1..H, pixel lanes 1..W (stride cin).
            buf[1:H + 1, cin:(W + 1) * cin] = interior.astype(buf.dtype)

        # Stage the input row-slab (H, W*Cin) into buffer A.
        stage(buf_a, Cin, x_ref[0])

        y2d = None
        for l in range(L):                       # static unroll over conv layers
            cin = cins[l]
            src = bufs[l % 2]
            bias = b_refs[l][...]                # (1, W*Cout), hoisted per layer

            # 3 fat MXU matmuls (one per kernel row dy): K=(W+2)*cin, N=W*Cout.
            # bf16 operands, f32 accumulation (preferred_element_type).
            acc = None
            for dy in range(3):
                slab = src[dy:dy + H, 0:(W + 2) * cin].astype(jnp.bfloat16)
                part = jnp.dot(slab, w_refs[l][dy],
                               preferred_element_type=jnp.float32)
                acc = part if acc is None else acc + part
            y2d = jnp.maximum(acc + bias, 0.0)   # f32 bias + ReLU, (H, W*Cout)
            if l + 1 < L:                        # feed next layer via VMEM only
                stage(bufs[(l + 1) % 2], Cout, y2d)

        # Lane-dense pre-pool output: ONE unmasked (H, W*Cout) store.
        pre_ref[0] = y2d.astype(pre_ref.dtype)

        # Fused MaxPool2d(2,2):
        #   rows:    leading-dim split + max (keeps the 128-lane minor dim),
        #   columns: two exact 0/1 selection matmuls (f32) + max,
        #   then ONE lane-dense (H/2, (W/2)*Cout) store.
        r3 = y2d.reshape(Hh, 2, W * Cout)
        rows_max = jnp.maximum(r3[:, 0], r3[:, 1])           # (H/2, W*Cout)
        even = jnp.dot(rows_max, sel_ref[0], preferred_element_type=jnp.float32)
        odd = jnp.dot(rows_max, sel_ref[1], preferred_element_type=jnp.float32)
        pool_ref[0] = jnp.maximum(even, odd).astype(pool_ref.dtype)

    return kernel


# ----------------------------------------------------------------------------
# Wrapper: one pallas_call for the whole encoder block
# ----------------------------------------------------------------------------
def encoder_block_forward(x_flat, banded_ws, bias_rows, pool_sel, cin0, cout, H, W):
    """x_flat: (N, H, W*Cin) lane-dense NHWC; banded_ws[l]: (3,(W+2)*cin_l,W*Cout)
    bf16; bias_rows[l]: (1, W*Cout) f32; pool_sel: (2, W*Cout, (W/2)*Cout) f32.
    Returns lane-dense (N, H, W*Cout) pre-pool and (N, H/2, (W/2)*Cout) pooled."""
    N = x_flat.shape[0]
    L = len(banded_ws)
    Hh, Wh = H // 2, W // 2
    Cbuf = max(cin0, cout)

    operands = [x_flat]
    in_specs = [pl.BlockSpec((1, H, W * cin0), lambda n: (n, 0, 0))]
    for wb, br in zip(banded_ws, bias_rows):
        operands += [wb, br]
        in_specs += [pl.BlockSpec(wb.shape, lambda n: (0, 0, 0)),
                     pl.BlockSpec(br.shape, lambda n: (0, 0))]
    operands.append(pool_sel)
    in_specs.append(pl.BlockSpec(pool_sel.shape, lambda n: (0, 0, 0)))

    kernel = _make_encoder_kernel(L, H, W, cin0, cout)

    # VMEM budget: 2 lane-dense f32 scratch slabs of (H+2)*(W+2)*Cbuf*4 bytes
    # (no 8-lane padding blowup) + double-buffered in/out blocks; tiny here.
    # NOTE: for large images switch grid=(N,) to a row-strip grid with a 2-row
    # halo and re-budget against v7x's 64 MiB (and v5e's 16 MiB scoped default).
    pre, pooled = pl.pallas_call(
        kernel,
        out_shape=(
            jax.ShapeDtypeStruct((N, H, W * cout), x_flat.dtype),      # pre-pool
            jax.ShapeDtypeStruct((N, Hh, Wh * cout), x_flat.dtype),    # pooled
        ),
        grid=(N,),
        in_specs=in_specs,
        out_specs=(
            pl.BlockSpec((1, H, W * cout), lambda n: (n, 0, 0)),
            pl.BlockSpec((1, Hh, Wh * cout), lambda n: (n, 0, 0)),
        ),
        scratch_shapes=[
            pltpu.VMEM((H + 2, (W + 2) * Cbuf), jnp.float32),   # ping (lane-dense)
            pltpu.VMEM((H + 2, (W + 2) * Cbuf), jnp.float32),   # pong (lane-dense)
        ],
        compiler_params=pltpu.CompilerParams(
            dimension_semantics=("parallel",),
            vmem_limit_bytes=32 * 1024 * 1024,   # explicit: v5e default is 16 MiB
        ),
    )(*operands)
    return pre, pooled


# ----------------------------------------------------------------------------
# Module wrapper mirroring EncoderBlock2.forward
# ----------------------------------------------------------------------------
class EncoderBlock2:
    def __init__(self, in_channels, out_channels, count_conv, key):
        self.in_channels = in_channels
        self.out_channels = out_channels
        self.count_conv = count_conv
        self.weights, self.biases = [], []       # HWIO f32 (reference / export)
        cin = in_channels
        for _ in range(count_conv):
            key, kw, kb = jax.random.split(key, 3)
            fan_in = cin * 9
            bound = 1.0 / (fan_in ** 0.5)        # torch Conv2d default init bound
            self.weights.append(jax.random.uniform(
                kw, (3, 3, cin, out_channels), jnp.float32, -bound, bound))
            self.biases.append(jax.random.uniform(
                kb, (out_channels,), jnp.float32, -bound, bound))
            cin = out_channels
        self._packed = None                      # cached per spatial width

    def _pack_params(self, width):
        # Hoisted out of the forward pass (built once per width, then cached):
        # banded bf16 weights, tiled bias rows, max-pool column selectors.
        if self._packed is not None and self._packed[0] == width:
            return self._packed[1:]
        wb = [_banded_conv_weights(w, width) for w in self.weights]
        br = [jnp.tile(b, (width,)).reshape(1, width * self.out_channels)
              for b in self.biases]
        sel = _pool_selectors(width, self.out_channels)
        self._packed = (width, wb, br, sel)
        return wb, br, sel

    def __call__(self, x_nchw):
        N, Cin, H, W = x_nchw.shape
        Cout = self.out_channels
        wb, br, sel = self._pack_params(W)
        # One tiny NCHW->NHWC transpose, then a free (contiguity-preserving)
        # flatten to the lane-dense (N, H, W*Cin) layout the kernel consumes.
        x = jnp.transpose(x_nchw, (0, 2, 3, 1)).reshape(N, H, W * Cin)
        pre_flat, pool_flat = encoder_block_forward(x, wb, br, sel,
                                                    Cin, Cout, H, W)
        # Lane-dense kernel outputs reshape back to NHWC for free; the skip
        # tensor is kept NHWC (transpose only when actually consumed).
        self.pre_pool_out = pre_flat.reshape(N, H, W, Cout)    # NHWC skip tensor
        pooled = pool_flat.reshape(N, H // 2, W // 2, Cout)
        return jnp.transpose(pooled, (0, 3, 1, 2))             # NCHW like torch


# ----------------------------------------------------------------------------
# Pure-XLA reference for verification
# ----------------------------------------------------------------------------
def reference(x_nchw, weights, biases):
    out = jnp.transpose(x_nchw, (0, 2, 3, 1))
    for w, b in zip(weights, biases):
        out = jax.lax.conv_general_dilated(
            out, w, window_strides=(1, 1), padding="SAME",
            dimension_numbers=("NHWC", "HWIO", "NHWC"),
            precision=jax.lax.Precision.HIGHEST)
        out = jnp.maximum(out + b, 0.0)
    pre = out                                               # NHWC pre-pool
    pooled = jax.lax.reduce_window(out, -jnp.inf, jax.lax.max,
                                   (1, 2, 2, 1), (1, 2, 2, 1), "VALID")
    return pre, jnp.transpose(pooled, (0, 3, 1, 2))         # NCHW pooled


if __name__ == "__main__":
    key = jax.random.PRNGKey(0)
    kx, kp = jax.random.split(key)

    N, Cin, Cout, H, W = 2, 4, 8, 16, 16
    count_conv = 2
    x = jax.random.normal(kx, (N, Cin, H, W), jnp.float32)   # NCHW, like PyTorch

    block = EncoderBlock2(Cin, Cout, count_conv, kp)
    out = jax.block_until_ready(block(x))
    assert out.shape == (N, Cout, H // 2, W // 2), out.shape

    ref_pre, ref_out = reference(x, block.weights, block.biases)
    ref_out = jax.block_until_ready(ref_out)
    # Tolerance sized for bf16 MXU operands (per perf review) vs the f32
    # Precision.HIGHEST reference; accumulation stays f32 inside the kernel.
    err_pool = float(jnp.max(jnp.abs(out - ref_out)))
    err_pre = float(jnp.max(jnp.abs(block.pre_pool_out - ref_pre)))
    assert jnp.allclose(out, ref_out, atol=2e-2, rtol=2e-2), err_pool
    assert jnp.allclose(block.pre_pool_out, ref_pre, atol=2e-2, rtol=2e-2), err_pre
    assert float(jnp.mean(jnp.abs(out - ref_out))) < 5e-3, "mean error too high"

    print("KERNEL_OK")
</pallas_src>

<mosaic_0001>
module attributes {stable_mosaic.version = 11 : i64} {
  func.func @kernel(%arg0: i32, %arg1: memref<1x16x64xf32, #tpu.memory_space<vmem>>, %arg2: memref<3x72x128xbf16, #tpu.memory_space<vmem>>, %arg3: memref<1x128xf32, #tpu.memory_space<vmem>>, %arg4: memref<3x144x128xbf16, #tpu.memory_space<vmem>>, %arg5: memref<1x128xf32, #tpu.memory_space<vmem>>, %arg6: memref<2x128x64xf32, #tpu.memory_space<vmem>>, %arg7: memref<1x16x128xf32, #tpu.memory_space<vmem>>, %arg8: memref<1x8x64xf32, #tpu.memory_space<vmem>>, %arg9: memref<18x144xf32, #tpu.memory_space<vmem>>, %arg10: memref<18x144xf32, #tpu.memory_space<vmem>>) attributes {dimension_semantics = [#tpu.dimension_semantics<parallel>], iteration_bounds = array<i64: 2>, scalar_prefetch = 0 : i64, scratch_operands = 2 : i64, tpu.core_type = #tpu.core_type<tc>, window_params = [{transform_indices = @transform_0, window_bounds = array<i64: 1, 16, 64>}, {pipeline_mode = #tpu.pipeline_mode<synchronous>, transform_indices = @transform_1, window_bounds = array<i64: 3, 72, 128>}, {pipeline_mode = #tpu.pipeline_mode<synchronous>, transform_indices = @transform_2, window_bounds = array<i64: 1, 128>}, {pipeline_mode = #tpu.pipeline_mode<synchronous>, transform_indices = @transform_3, window_bounds = array<i64: 3, 144, 128>}, {pipeline_mode = #tpu.pipeline_mode<synchronous>, transform_indices = @transform_4, window_bounds = array<i64: 1, 128>}, {pipeline_mode = #tpu.pipeline_mode<synchronous>, transform_indices = @transform_5, window_bounds = array<i64: 2, 128, 64>}, {transform_indices = @transform_6, window_bounds = array<i64: 1, 16, 128>}, {transform_indices = @transform_7, window_bounds = array<i64: 1, 8, 64>}]} {
    %c0 = arith.constant 0 : index
    %c0_0 = arith.constant 0 : index
    %c0_1 = arith.constant 0 : index
    %0 = vector.load %arg1[%c0, %c0_0, %c0_1] : memref<1x16x64xf32, #tpu.memory_space<vmem>>, vector<1x16x64xf32>
    %1 = vector.shape_cast %0 : vector<1x16x64xf32> to vector<16x64xf32>
    %cst = arith.constant 0.000000e+00 : f32
    %2 = vector.broadcast %cst : f32 to vector<1x144xf32>
    %c0_2 = arith.constant 0 : index
    %c0_3 = arith.constant 0 : index
    %3 = vector.load %arg9[%c0_2, %c0_3] : memref<18x144xf32, #tpu.memory_space<vmem>>, vector<1x144xf32>
    tpu.vector_store %arg9[%c0_2, %c0_3], %2 {strides = array<i32>} : memref<18x144xf32, #tpu.memory_space<vmem>>, vector<1x144xf32>,
    %cst_4 = arith.constant 0.000000e+00 : f32
    %4 = vector.broadcast %cst_4 : f32 to vector<1x144xf32>
    %c17 = arith.constant 17 : index
    %c0_5 = arith.constant 0 : index
    %5 = vector.load %arg9[%c17, %c0_5] : memref<18x144xf32, #tpu.memory_space<vmem>>, vector<1x144xf32>
    tpu.vector_store %arg9[%c17, %c0_5], %4 {strides = array<i32>} : memref<18x144xf32, #tpu.memory_space<vmem>>, vector<1x144xf32>,
    %cst_6 = arith.constant 0.000000e+00 : f32
    %6 = vector.broadcast %cst_6 : f32 to vector<18x4xf32>
    %c0_7 = arith.constant 0 : index
    %c0_8 = arith.constant 0 : index
    %7 = vector.load %arg9[%c0_7, %c0_8] : memref<18x144xf32, #tpu.memory_space<vmem>>, vector<18x4xf32>
    tpu.vector_store %arg9[%c0_7, %c0_8], %6 {strides = array<i32>} : memref<18x144xf32, #tpu.memory_space<vmem>>, vector<18x4xf32>,
    %cst_9 = arith.constant 0.000000e+00 : f32
    %8 = vector.broadcast %cst_9 : f32 to vector<18x4xf32>
    %c0_10 = arith.constant 0 : index
    %c68 = arith.constant 68 : index
    %9 = vector.load %arg9[%c0_10, %c68] : memref<18x144xf32, #tpu.memory_space<vmem>>, vector<18x4xf32>
    tpu.vector_store %arg9[%c0_10, %c68], %8 {strides = array<i32>} : memref<18x144xf32, #tpu.memory_space<vmem>>, vector<18x4xf32>,
    %c1 = arith.constant 1 : index
    %c4 = arith.constant 4 : index
    %10 = vector.load %arg9[%c1, %c4] : memref<18x144xf32, #tpu.memory_space<vmem>>, vector<16x64xf32>
    tpu.vector_store %arg9[%c1, %c4], %1 {strides = array<i32>} : memref<18x144xf32, #tpu.memory_space<vmem>>, vector<16x64xf32>,
    %c0_11 = arith.constant 0 : index
    %c0_12 = arith.constant 0 : index
    %11 = vector.load %arg3[%c0_11, %c0_12] : memref<1x128xf32, #tpu.memory_space<vmem>>, vector<1x128xf32>
    %c0_13 = arith.constant 0 : index
    %c0_14 = arith.constant 0 : index
    %12 = vector.load %arg9[%c0_13, %c0_14] : memref<18x144xf32, #tpu.memory_space<vmem>>, vector<16x72xf32>
    %13 = arith.truncf %12 : vector<16x72xf32> to vector<16x72xbf16>
    %c0_15 = arith.constant 0 : index
    %c0_16 = arith.constant 0 : index
    %c0_17 = arith.constant 0 : index
    %14 = vector.load %arg2[%c0_15, %c0_16, %c0_17] : memref<3x72x128xbf16, #tpu.memory_space<vmem>>, vector<1x72x128xbf16>
    %15 = vector.shape_cast %14 : vector<1x72x128xbf16> to vector<72x128xbf16>
    %cst_18 = arith.constant dense<0.000000e+00> : vector<16x128xf32>
    %16 = tpu.matmul %13, %15, %cst_18 {dimension_numbers = #tpu.dot_dimension_numbers<[1], [0], [0], [1], [0, 0, 1, 1], [], []>} : vector<16x72xbf16>, vector<72x128xbf16>, vector<16x128xf32> -> vector<16x128xf32>
    %c1_19 = arith.constant 1 : index
    %c0_20 = arith.constant 0 : index
    %17 = vector.load %arg9[%c1_19, %c0_20] : memref<18x144xf32, #tpu.memory_space<vmem>>, vector<16x72xf32>
    %18 = arith.truncf %17 : vector<16x72xf32> to vector<16x72xbf16>
    %c1_21 = arith.constant 1 : index
    %c0_22 = arith.constant 0 : index
    %c0_23 = arith.constant 0 : index
    %19 = vector.load %arg2[%c1_21, %c0_22, %c0_23] : memref<3x72x128xbf16, #tpu.memory_space<vmem>>, vector<1x72x128xbf16>
    %20 = vector.shape_cast %19 : vector<1x72x128xbf16> to vector<72x128xbf16>
    %cst_24 = arith.constant dense<0.000000e+00> : vector<16x128xf32>
    %21 = tpu.matmul %18, %20, %cst_24 {dimension_numbers = #tpu.dot_dimension_numbers<[1], [0], [0], [1], [0, 0, 1, 1], [], []>} : vector<16x72xbf16>, vector<72x128xbf16>, vector<16x128xf32> -> vector<16x128xf32>
    %22 = arith.addf %16, %21 : vector<16x128xf32>
    %c2 = arith.constant 2 : index
    %c0_25 = arith.constant 0 : index
    %23 = vector.load %arg9[%c2, %c0_25] : memref<18x144xf32, #tpu.memory_space<vmem>>, vector<16x72xf32>
    %24 = arith.truncf %23 : vector<16x72xf32> to vector<16x72xbf16>
    %c2_26 = arith.constant 2 : index
    %c0_27 = arith.constant 0 : index
    %c0_28 = arith.constant 0 : index
    %25 = vector.load %arg2[%c2_26, %c0_27, %c0_28] : memref<3x72x128xbf16, #tpu.memory_space<vmem>>, vector<1x72x128xbf16>
    %26 = vector.shape_cast %25 : vector<1x72x128xbf16> to vector<72x128xbf16>
    %cst_29 = arith.constant dense<0.000000e+00> : vector<16x128xf32>
    %27 = tpu.matmul %24, %26, %cst_29 {dimension_numbers = #tpu.dot_dimension_numbers<[1], [0], [0], [1], [0, 0, 1, 1], [], []>} : vector<16x72xbf16>, vector<72x128xbf16>, vector<16x128xf32> -> vector<16x128xf32>
    %28 = arith.addf %22, %27 : vector<16x128xf32>
    %29 = vector.broadcast %11 : vector<1x128xf32> to vector<16x128xf32>
    %30 = arith.addf %28, %29 : vector<16x128xf32>
    %cst_30 = arith.constant 0.000000e+00 : f32
    %31 = vector.broadcast %cst_30 : f32 to vector<16x128xf32>
    %32 = arith.maximumf %30, %31 : vector<16x128xf32>
    %cst_31 = arith.constant 0.000000e+00 : f32
    %33 = vector.broadcast %cst_31 : f32 to vector<1x144xf32>
    %c0_32 = arith.constant 0 : index
    %c0_33 = arith.constant 0 : index
    %34 = vector.load %arg10[%c0_32, %c0_33] : memref<18x144xf32, #tpu.memory_space<vmem>>, vector<1x144xf32>
    tpu.vector_store %arg10[%c0_32, %c0_33], %33 {strides = array<i32>} : memref<18x144xf32, #tpu.memory_space<vmem>>, vector<1x144xf32>,
    %cst_34 = arith.constant 0.000000e+00 : f32
    %35 = vector.broadcast %cst_34 : f32 to vector<1x144xf32>
    %c17_35 = arith.constant 17 : index
    %c0_36 = arith.constant 0 : index
    %36 = vector.load %arg10[%c17_35, %c0_36] : memref<18x144xf32, #tpu.memory_space<vmem>>, vector<1x144xf32>
    tpu.vector_store %arg10[%c17_35, %c0_36], %35 {strides = array<i32>} : memref<18x144xf32, #tpu.memory_space<vmem>>, vector<1x144xf32>,
    %cst_37 = arith.constant 0.000000e+00 : f32
    %37 = vector.broadcast %cst_37 : f32 to vector<18x8xf32>
    %c0_38 = arith.constant 0 : index
    %c0_39 = arith.constant 0 : index
    %38 = vector.load %arg10[%c0_38, %c0_39] : memref<18x144xf32, #tpu.memory_space<vmem>>, vector<18x8xf32>
    tpu.vector_store %arg10[%c0_38, %c0_39], %37 {strides = array<i32>} : memref<18x144xf32, #tpu.memory_space<vmem>>, vector<18x8xf32>,
    %cst_40 = arith.constant 0.000000e+00 : f32
    %39 = vector.broadcast %cst_40 : f32 to vector<18x8xf32>
    %c0_41 = arith.constant 0 : index
    %c136 = arith.constant 136 : index
    %40 = vector.load %arg10[%c0_41, %c136] : memref<18x144xf32, #tpu.memory_space<vmem>>, vector<18x8xf32>
    tpu.vector_store %arg10[%c0_41, %c136], %39 {strides = array<i32>} : memref<18x144xf32, #tpu.memory_space<vmem>>, vector<18x8xf32>,
    %c1_42 = arith.constant 1 : index
    %c8 = arith.constant 8 : index
    %41 = vector.load %arg10[%c1_42, %c8] : memref<18x144xf32, #tpu.memory_space<vmem>>, vector<16x128xf32>
    tpu.vector_store %arg10[%c1_42, %c8], %32 {strides = array<i32>} : memref<18x144xf32, #tpu.memory_space<vmem>>, vector<16x128xf32>,
    %c0_43 = arith.constant 0 : index
    %c0_44 = arith.constant 0 : index
    %42 = vector.load %arg5[%c0_43, %c0_44] : memref<1x128xf32, #tpu.memory_space<vmem>>, vector<1x128xf32>
    %c0_45 = arith.constant 0 : index
    %c0_46 = arith.constant 0 : index
    %43 = vector.load %arg10[%c0_45, %c0_46] : memref<18x144xf32, #tpu.memory_space<vmem>>, vector<16x144xf32>
    %44 = arith.truncf %43 : vector<16x144xf32> to vector<16x144xbf16>
    %c0_47 = arith.constant 0 : index
    %c0_48 = arith.constant 0 : index
    %c0_49 = arith.constant 0 : index
    %45 = vector.load %arg4[%c0_47, %c0_48, %c0_49] : memref<3x144x128xbf16, #tpu.memory_space<vmem>>, vector<1x144x128xbf16>
    %46 = vector.shape_cast %45 : vector<1x144x128xbf16> to vector<144x128xbf16>
    %cst_50 = arith.constant dense<0.000000e+00> : vector<16x128xf32>
    %47 = tpu.matmul %44, %46, %cst_50 {dimension_numbers = #tpu.dot_dimension_numbers<[1], [0], [0], [1], [0, 0, 1, 1], [], []>} : vector<16x144xbf16>, vector<144x128xbf16>, vector<16x128xf32> -> vector<16x128xf32>
    %c1_51 = arith.constant 1 : index
    %c0_52 = arith.constant 0 : index
    %48 = vector.load %arg10[%c1_51, %c0_52] : memref<18x144xf32, #tpu.memory_space<vmem>>, vector<16x144xf32>
    %49 = arith.truncf %48 : vector<16x144xf32> to vector<16x144xbf16>
    %c1_53 = arith.constant 1 : index
    %c0_54 = arith.constant 0 : index
    %c0_55 = arith.constant 0 : index
    %50 = vector.load %arg4[%c1_53, %c0_54, %c0_55] : memref<3x144x128xbf16, #tpu.memory_space<vmem>>, vector<1x144x128xbf16>
    %51 = vector.shape_cast %50 : vector<1x144x128xbf16> to vector<144x128xbf16>
    %cst_56 = arith.constant dense<0.000000e+00> : vector<16x128xf32>
    %52 = tpu.matmul %49, %51, %cst_56 {dimension_numbers = #tpu.dot_dimension_numbers<[1], [0], [0], [1], [0, 0, 1, 1], [], []>} : vector<16x144xbf16>, vector<144x128xbf16>, vector<16x128xf32> -> vector<16x128xf32>
    %53 = arith.addf %47, %52 : vector<16x128xf32>
    %c2_57 = arith.constant 2 : index
    %c0_58 = arith.constant 0 : index
    %54 = vector.load %arg10[%c2_57, %c0_58] : memref<18x144xf32, #tpu.memory_space<vmem>>, vector<16x144xf32>
    %55 = arith.truncf %54 : vector<16x144xf32> to vector<16x144xbf16>
    %c2_59 = arith.constant 2 : index
    %c0_60 = arith.constant 0 : index
    %c0_61 = arith.constant 0 : index
    %56 = vector.load %arg4[%c2_59, %c0_60, %c0_61] : memref<3x144x128xbf16, #tpu.memory_space<vmem>>, vector<1x144x128xbf16>
    %57 = vector.shape_cast %56 : vector<1x144x128xbf16> to vector<144x128xbf16>
    %cst_62 = arith.constant dense<0.000000e+00> : vector<16x128xf32>
    %58 = tpu.matmul %55, %57, %cst_62 {dimension_numbers = #tpu.dot_dimension_numbers<[1], [0], [0], [1], [0, 0, 1, 1], [], []>} : vector<16x144xbf16>, vector<144x128xbf16>, vector<16x128xf32> -> vector<16x128xf32>
    %59 = arith.addf %53, %58 : vector<16x128xf32>
    %60 = vector.broadcast %42 : vector<1x128xf32> to vector<16x128xf32>
    %61 = arith.addf %59, %60 : vector<16x128xf32>
    %cst_63 = arith.constant 0.000000e+00 : f32
    %62 = vector.broadcast %cst_63 : f32 to vector<16x128xf32>
    %63 = arith.maximumf %61, %62 : vector<16x128xf32>
    %c0_64 = arith.constant 0 : index
    %c0_65 = arith.constant 0 : index
    %c0_66 = arith.constant 0 : index
    %64 = vector.load %arg7[%c0_64, %c0_65, %c0_66] : memref<1x16x128xf32, #tpu.memory_space<vmem>>, vector<1x16x128xf32>
    %65 = vector.shape_cast %64 : vector<1x16x128xf32> to vector<16x128xf32>
    %66 = vector.shape_cast %63 : vector<16x128xf32> to vector<1x16x128xf32>
    tpu.vector_store %arg7[%c0_64, %c0_65, %c0_66], %66 {strides = array<i32>} : memref<1x16x128xf32, #tpu.memory_space<vmem>>, vector<1x16x128xf32>,
    %67 = vector.shape_cast %63 : vector<16x128xf32> to vector<8x2x128xf32>
    %68 = vector.extract_strided_slice %67 {offsets = [0, 0, 0], sizes = [8, 1, 128], strides = [1, 1, 1]} : vector<8x2x128xf32> to vector<8x1x128xf32>
    %69 = vector.shape_cast %68 : vector<8x1x128xf32> to vector<8x128xf32>
    %70 = vector.extract_strided_slice %67 {offsets = [0, 1, 0], sizes = [8, 1, 128], strides = [1, 1, 1]} : vector<8x2x128xf32> to vector<8x1x128xf32>
    %71 = vector.shape_cast %70 : vector<8x1x128xf32> to vector<8x128xf32>
    %72 = arith.maximumf %69, %71 : vector<8x128xf32>
    %c0_67 = arith.constant 0 : index
    %c0_68 = arith.constant 0 : index
    %c0_69 = arith.constant 0 : index
    %73 = vector.load %arg6[%c0_67, %c0_68, %c0_69] : memref<2x128x64xf32, #tpu.memory_space<vmem>>, vector<1x128x64xf32>
    %74 = vector.shape_cast %73 : vector<1x128x64xf32> to vector<128x64xf32>
    %cst_70 = arith.constant dense<0.000000e+00> : vector<8x64xf32>
    %75 = tpu.matmul %72, %74, %cst_70 {dimension_numbers = #tpu.dot_dimension_numbers<[1], [0], [0], [1], [0, 0, 1, 1], [], []>} : vector<8x128xf32>, vector<128x64xf32>, vector<8x64xf32> -> vector<8x64xf32>
    %c1_71 = arith.constant 1 : index
    %c0_72 = arith.constant 0 : index
    %c0_73 = arith.constant 0 : index
    %76 = vector.load %arg6[%c1_71, %c0_72, %c0_73] : memref<2x128x64xf32, #tpu.memory_space<vmem>>, vector<1x128x64xf32>
    %77 = vector.shape_cast %76 : vector<1x128x64xf32> to vector<128x64xf32>
    %cst_74 = arith.constant dense<0.000000e+00> : vector<8x64xf32>
    %78 = tpu.matmul %72, %77, %cst_74 {dimension_numbers = #tpu.dot_dimension_numbers<[1], [0], [0], [1], [0, 0, 1, 1], [], []>} : vector<8x128xf32>, vector<128x64xf32>, vector<8x64xf32> -> vector<8x64xf32>
    %79 = arith.maximumf %75, %78 : vector<8x64xf32>
    %c0_75 = arith.constant 0 : index
    %c0_76 = arith.constant 0 : index
    %c0_77 = arith.constant 0 : index
    %80 = vector.load %arg8[%c0_75, %c0_76, %c0_77] : memref<1x8x64xf32, #tpu.memory_space<vmem>>, vector<1x8x64xf32>
    %81 = vector.shape_cast %80 : vector<1x8x64xf32> to vector<8x64xf32>
    %82 = vector.shape_cast %79 : vector<8x64xf32> to vector<1x8x64xf32>
    tpu.vector_store %arg8[%c0_75, %c0_76, %c0_77], %82 {strides = array<i32>} : memref<1x8x64xf32, #tpu.memory_space<vmem>>, vector<1x8x64xf32>,
    return
  }
  func.func @transform_0(%arg0: i32) -> (i32, i32, i32) {
    %c0_i32 = arith.constant 0 : i32
    %c0_i32_0 = arith.constant 0 : i32
    %c0_i32_1 = arith.constant 0 : i32
    return %arg0, %c0_i32, %c0_i32_0 : i32, i32, i32
  }
  func.func @transform_1(%arg0: i32) -> (i32, i32, i32) {
    %c0_i32 = arith.constant 0 : i32
    %c0_i32_0 = arith.constant 0 : i32
    %c0_i32_1 = arith.constant 0 : i32
    %c0_i32_2 = arith.constant 0 : i32
    return %c0_i32, %c0_i32_0, %c0_i32_1 : i32, i32, i32
  }
  func.func @transform_2(%arg0: i32) -> (i32, i32) {
    %c0_i32 = arith.constant 0 : i32
    %c0_i32_0 = arith.constant 0 : i32
    %c0_i32_1 = arith.constant 0 : i32
    return %c0_i32, %c0_i32_0 : i32, i32
  }
  func.func @transform_3(%arg0: i32) -> (i32, i32, i32) {
    %c0_i32 = arith.constant 0 : i32
    %c0_i32_0 = arith.constant 0 : i32
    %c0_i32_1 = arith.constant 0 : i32
    %c0_i32_2 = arith.constant 0 : i32
    return %c0_i32, %c0_i32_0, %c0_i32_1 : i32, i32, i32
  }
  func.func @transform_4(%arg0: i32) -> (i32, i32) {
    %c0_i32 = arith.constant 0 : i32
    %c0_i32_0 = arith.constant 0 : i32
    %c0_i32_1 = arith.constant 0 : i32
    return %c0_i32, %c0_i32_0 : i32, i32
  }
  func.func @transform_5(%arg0: i32) -> (i32, i32, i32) {
    %c0_i32 = arith.constant 0 : i32
    %c0_i32_0 = arith.constant 0 : i32
    %c0_i32_1 = arith.constant 0 : i32
    %c0_i32_2 = arith.constant 0 : i32
    return %c0_i32, %c0_i32_0, %c0_i32_1 : i32, i32, i32
  }
  func.func @transform_6(%arg0: i32) -> (i32, i32, i32) {
    %c0_i32 = arith.constant 0 : i32
    %c0_i32_0 = arith.constant 0 : i32
    %c0_i32_1 = arith.constant 0 : i32
    return %arg0, %c0_i32, %c0_i32_0 : i32, i32, i32
  }
  func.func @transform_7(%arg0: i32) -> (i32, i32, i32) {
    %c0_i32 = arith.constant 0 : i32
    %c0_i32_0 = arith.constant 0 : i32
    %c0_i32_1 = arith.constant 0 : i32
    return %arg0, %c0_i32, %c0_i32_0 : i32, i32, i32
  }
}

</mosaic_0001>

<llo_original>
// kernel: tpu_custom_call.1
$region0: #{tpu_custom_call.1}
  #allocation0 [shape = 'u32[]', space=smem, size = 0x4, offset = 0x4, fixed_abs, tag = 'smem constant byte address 0x4 - core index']
  #allocation1 [shape = 'u32[144,128]{1,0:T(1,128)}', space=vmem, size = 0x12000, scoped, tag = 'internal scratch']
  #allocation2 [shape = 'f32[18,144]{1,0:T(8,128)}', space=vmem, size = 0x6000, scoped, tag = 'scratch operand']
  #allocation3 [shape = 'f32[18,144]{1,0:T(8,128)}', space=vmem, size = 0x6000, scoped, tag = 'scratch operand']
  %s0 = inlined_call_operand.vmem [shape: f32[2,16,64], index: 0, kind: input, shape index: {}]
  %s1 = inlined_call_operand.vmem [shape: bf16[3,72,128], index: 1, kind: input, shape index: {}]
  %s2 = inlined_call_operand.vmem [shape: f32[1,128], index: 2, kind: input, shape index: {}]
  %s3 = inlined_call_operand.vmem [shape: bf16[3,144,128], index: 3, kind: input, shape index: {}]
  %s4 = inlined_call_operand.vmem [shape: f32[1,128], index: 4, kind: input, shape index: {}]
  %s5 = inlined_call_operand.vmem [shape: f32[2,128,64], index: 5, kind: input, shape index: {}]
  %s6 = inlined_call_operand.hbm [shape: f32[2,16,128], index: 6, kind: output, shape index: {0}]
  %s7 = inlined_call_operand.hbm [shape: f32[2,8,64], index: 7, kind: output, shape index: {1}]
  %8 = xla_tuple %s6, %s7
  %s9 = sld [smem:[#allocation0]]
  $region65: #{tpu_custom_call.1} parent=0
    _
  %s11 = ssub.s32 1, %s9
  %s12 = scalar_select 0, %s11, %s9
  $region1: #{tpu_custom_call.1} parent=0
    #allocation4 [shape = 'u8[16384]{0}', space=vmem, size = 0x4000, scoped, tag = 'output window, operand 0']
    #allocation5 [shape = 's32[2]{0}', space=sflag, size = 0x8, scoped, tag = 'scoped memory for tpu_custom_call.1']
    #allocation6 [shape = 'u8[8192]{0}', space=vmem, size = 0x2000, scoped, tag = 'output window, operand 1']
    #allocation7 [shape = 's32[2]{0}', space=sflag, size = 0x8, scoped, tag = 'scoped memory for tpu_custom_call.1']
    %13 = vsyncpa [#allocation5], 0
    %s14 = scalar_lea.sflag [#allocation5], 1
    %15 = vsyncpa %s14, 0
    %16 = vsyncpa [#allocation7], 0
    %s17 = scalar_lea.sflag [#allocation7], 1
    %18 = vsyncpa %s17, 0
    loop: start=0, step=1, limit=4
    $region2: #{tpu_custom_call.1} parent=1 // loop_pre_header
      _
    $region3: #{tpu_custom_call.1} parent=1 // loop_header
      %s20 = sphi 0, %s24
      %p21 = scmp.ge.s32.totalorder %s20, 4
      %s30 = sphi 0, %s32
      %s33 = sphi 0, %s30
      %s34 = sphi 0, %s33
      %s50 = sphi 0, %s34
      %s54 = sphi 0, %s54
      %s56 = sphi 0, %s54
      %s57 = sphi 0, %s56
      %s71 = sphi 0, %s57
      %s75 = sphi 0, %s75
      %s77 = sphi 0, %s75
      %s78 = sphi 0, %s77
      %s92 = sphi 0, %s78
      %s96 = sphi 0, %s96
      %s98 = sphi 0, %s96
      %s99 = sphi 0, %s98
      %s113 = sphi 0, %s99
      %s117 = sphi 0, %s117
      %s119 = sphi 0, %s117
      %s120 = sphi 0, %s119
      %s134 = sphi 0, %s120
      %s138 = sphi 0, %s138
      %s140 = sphi 0, %s138
      %s141 = sphi 0, %s140
      %s155 = sphi 0, %s141
      %s161 = sphi 0, %s163
      %s164 = sphi 0, %s161
      %s165 = sphi 0, %s164
      %s181 = sphi 0, %s165
      %s187 = sphi 0, %s189
      %s190 = sphi 0, %s187
      %s191 = sphi 0, %s190
      %s207 = sphi 0, %s191
    $region4: #{tpu_custom_call.1} parent=1 // loop_header_branch
      %23 = sbr.rel (%p21) target = $region8
    $region5: #{tpu_custom_call.1} parent=1 // loop_body
      %s25 = ssub.s32 %s20, 1
      %s26 = ssub.s32 %s20, 2
      %s27 = sadd.s32 %s20, 1
      %s28 = ssub.s32 %s20, %s27
      %p29 = scmp.eq.s32.totalorder %s28, 0
      %s31 = sadd.s32 %s30, 1
      %s32 = scalar_select %p29, %s30, %s31
      %p35 = pneg %p29
      %p36 = scmp.eq.s32.totalorder %s20, 1
      %p37 = por %p35, %p36
      %p38 = scmp.ne.s32.totalorder %s30, %s33
      %p39 = scmp.eq.s32.totalorder %s20, 0
      %p40 = por %p38, %p39
      %p41 = scmp.ne.s32.totalorder %s30, %s33
      %p42 = scmp.eq.s32.totalorder %s25, 1
      %p43 = por %p41, %p42
      %p44 = scmp.ne.s32.totalorder %s33, %s34
      %p45 = scmp.eq.s32.totalorder %s25, 0
      %p46 = por %p44, %p45
      %p47 = scmp.ne.s32.totalorder %s33, %s34
      %p48 = scmp.eq.s32.totalorder %s26, 1
      %p49 = por %p47, %p48
      %p51 = scmp.ne.s32.totalorder %s34, %s50
      %p52 = scmp.eq.s32.totalorder %s26, 0
      %p53 = por %p51, %p52
      %s55 = sadd.s32 %s54, 1
      %p58 = scmp.eq.s32.totalorder %s20, 1
      %p59 = scmp.ne.s32.totalorder %s54, %s56
      %p60 = scmp.eq.s32.totalorder %s20, 0
      %p61 = por %p59, %p60
      %p62 = scmp.ne.s32.totalorder %s54, %s56
      %p63 = scmp.eq.s32.totalorder %s25, 1
      %p64 = por %p62, %p63
      %p65 = scmp.ne.s32.totalorder %s56, %s57
      %p66 = scmp.eq.s32.totalorder %s25, 0
      %p67 = por %p65, %p66
      %p68 = scmp.ne.s32.totalorder %s56, %s57
      %p69 = scmp.eq.s32.totalorder %s26, 1
      %p70 = por %p68, %p69
      %p72 = scmp.ne.s32.totalorder %s57, %s71
      %p73 = scmp.eq.s32.totalorder %s26, 0
      %p74 = por %p72, %p73
      %s76 = sadd.s32 %s75, 1
      %p79 = scmp.eq.s32.totalorder %s20, 1
      %p80 = scmp.ne.s32.totalorder %s75, %s77
      %p81 = scmp.eq.s32.totalorder %s20, 0
      %p82 = por %p80, %p81
      %p83 = scmp.ne.s32.totalorder %s75, %s77
      %p84 = scmp.eq.s32.totalorder %s25, 1
      %p85 = por %p83, %p84
      %p86 = scmp.ne.s32.totalorder %s77, %s78
      %p87 = scmp.eq.s32.totalorder %s25, 0
      %p88 = por %p86, %p87
      %p89 = scmp.ne.s32.totalorder %s77, %s78
      %p90 = scmp.eq.s32.totalorder %s26, 1
      %p91 = por %p89, %p90
      %p93 = scmp.ne.s32.totalorder %s78, %s92
      %p94 = scmp.eq.s32.totalorder %s26, 0
      %p95 = por %p93, %p94
      %s97 = sadd.s32 %s96, 1
      %p100 = scmp.eq.s32.totalorder %s20, 1
      %p101 = scmp.ne.s32.totalorder %s96, %s98
      %p102 = scmp.eq.s32.totalorder %s20, 0
      %p103 = por %p101, %p102
      %p104 = scmp.ne.s32.totalorder %s96, %s98
      %p105 = scmp.eq.s32.totalorder %s25, 1
      %p106 = por %p104, %p105
      %p107 = scmp.ne.s32.totalorder %s98, %s99
      %p108 = scmp.eq.s32.totalorder %s25, 0
      %p109 = por %p107, %p108
      %p110 = scmp.ne.s32.totalorder %s98, %s99
      %p111 = scmp.eq.s32.totalorder %s26, 1
      %p112 = por %p110, %p111
      %p114 = scmp.ne.s32.totalorder %s99, %s113
      %p115 = scmp.eq.s32.totalorder %s26, 0
      %p116 = por %p114, %p115
      %s118 = sadd.s32 %s117, 1
      %p121 = scmp.eq.s32.totalorder %s20, 1
      %p122 = scmp.ne.s32.totalorder %s117, %s119
      %p123 = scmp.eq.s32.totalorder %s20, 0
      %p124 = por %p122, %p123
      %p125 = scmp.ne.s32.totalorder %s117, %s119
      %p126 = scmp.eq.s32.totalorder %s25, 1
      %p127 = por %p125, %p126
      %p128 = scmp.ne.s32.totalorder %s119, %s120
      %p129 = scmp.eq.s32.totalorder %s25, 0
      %p130 = por %p128, %p129
      %p131 = scmp.ne.s32.totalorder %s119, %s120
      %p132 = scmp.eq.s32.totalorder %s26, 1
      %p133 = por %p131, %p132
      %p135 = scmp.ne.s32.totalorder %s120, %s134
      %p136 = scmp.eq.s32.totalorder %s26, 0
      %p137 = por %p135, %p136
      %s139 = sadd.s32 %s138, 1
      %p142 = scmp.eq.s32.totalorder %s20, 1
      %p143 = scmp.ne.s32.totalorder %s138, %s140
      %p144 = scmp.eq.s32.totalorder %s20, 0
      %p145 = por %p143, %p144
      %p146 = scmp.ne.s32.totalorder %s138, %s140
      %p147 = scmp.eq.s32.totalorder %s25, 1
      %p148 = por %p146, %p147
      %p149 = scmp.ne.s32.totalorder %s140, %s141
      %p150 = scmp.eq.s32.totalorder %s25, 0
      %p151 = por %p149, %p150
      %p152 = scmp.ne.s32.totalorder %s140, %s141
      %p153 = scmp.eq.s32.totalorder %s26, 1
      %p154 = por %p152, %p153
      %p156 = scmp.ne.s32.totalorder %s141, %s155
      %p157 = scmp.eq.s32.totalorder %s26, 0
      %p158 = por %p156, %p157
      %s159 = ssub.s32 %s20, %s27
      %p160 = scmp.eq.s32.totalorder %s159, 0
      %s162 = sadd.s32 %s161, 1
      %s163 = scalar_select %p160, %s161, %s162
      %p166 = pneg %p160
      %p167 = scmp.eq.s32.totalorder %s20, 1
      %p168 = por %p166, %p167
      %p169 = scmp.ne.s32.totalorder %s161, %s164
      %p170 = scmp.eq.s32.totalorder %s20, 0
      %p171 = por %p169, %p170
      %p172 = scmp.ne.s32.totalorder %s161, %s164
      %p173 = scmp.eq.s32.totalorder %s25, 1
      %p174 = por %p172, %p173
      %p175 = scmp.ne.s32.totalorder %s164, %s165
      %p176 = scmp.eq.s32.totalorder %s25, 0
      %p177 = por %p175, %p176
      %p178 = scmp.ne.s32.totalorder %s164, %s165
      %p179 = scmp.eq.s32.totalorder %s26, 1
      %p180 = por %p178, %p179
      %p182 = scmp.ne.s32.totalorder %s165, %s181
      %p183 = scmp.eq.s32.totalorder %s26, 0
      %p184 = por %p182, %p183
      %s185 = ssub.s32 %s20, %s27
      %p186 = scmp.eq.s32.totalorder %s185, 0
      %s188 = sadd.s32 %s187, 1
      %s189 = scalar_select %p186, %s187, %s188
      %p192 = pneg %p186
      %p193 = scmp.eq.s32.totalorder %s20, 1
      %p194 = por %p192, %p193
      %p195 = scmp.ne.s32.totalorder %s187, %s190
      %p196 = scmp.eq.s32.totalorder %s20, 0
      %p197 = por %p195, %p196
      %p198 = scmp.ne.s32.totalorder %s187, %s190
      %p199 = scmp.eq.s32.totalorder %s25, 1
      %p200 = por %p198, %p199
      %p201 = scmp.ne.s32.totalorder %s190, %s191
      %p202 = scmp.eq.s32.totalorder %s25, 0
      %p203 = por %p201, %p202
      %p204 = scmp.ne.s32.totalorder %s190, %s191
      %p205 = scmp.eq.s32.totalorder %s26, 1
      %p206 = por %p204, %p205
      %p208 = scmp.ne.s32.totalorder %s191, %s207
      %p209 = scmp.eq.s32.totalorder %s26, 0
      %p210 = por %p208, %p209
      %p211 = scmp.le.s32.totalorder 1, %s20
      %p212 = scmp.lt.s32.totalorder %s20, 3
      %p213 = pnand %p211, %p212
      %p214 = pneg %p213
      // Predicated region
      $region9: #{tpu_custom_call.1} parent=5 // pred_check
        _
      $region10: #{tpu_custom_call.1} parent=5 // pred_check_branch
        %216 = sbr.rel (%p213) target = $region12
      $region11: #{tpu_custom_call.1} parent=5 // pred_region
        %s217 = ssub.s32 %s20, 1
        // Predicated region
        $region13: #{tpu_custom_call.1} parent=11 // pred_check
          %p218 = pneg %p67
        $region14: #{tpu_custom_call.1} parent=11 // pred_check_branch
          %220 = sbr.rel (%p218) target = $region16
        $region15: #{tpu_custom_call.1} parent=11 // pred_region
          _
        $region16: #{tpu_custom_call.1} parent=11 // pred_fallthru
          _
        // Predicated region
        $region17: #{tpu_custom_call.1} parent=11 // pred_check
          %p221 = pneg %p88
        $region18: #{tpu_custom_call.1} parent=11 // pred_check_branch
          %223 = sbr.rel (%p221) target = $region20
        $region19: #{tpu_custom_call.1} parent=11 // pred_region
          _
        $region20: #{tpu_custom_call.1} parent=11 // pred_fallthru
          _
        // Predicated region
        $region21: #{tpu_custom_call.1} parent=11 // pred_check
          %p224 = pneg %p109
        $region22: #{tpu_custom_call.1} parent=11 // pred_check_branch
          %226 = sbr.rel (%p224) target = $region24
        $region23: #{tpu_custom_call.1} parent=11 // pred_region
          _
        $region24: #{tpu_custom_call.1} parent=11 // pred_fallthru
          _
        // Predicated region
        $region25: #{tpu_custom_call.1} parent=11 // pred_check
          %p227 = pneg %p130
        $region26: #{tpu_custom_call.1} parent=11 // pred_check_branch
          %229 = sbr.rel (%p227) target = $region28
        $region27: #{tpu_custom_call.1} parent=11 // pred_region
          _
        $region28: #{tpu_custom_call.1} parent=11 // pred_fallthru
          _
        // Predicated region
        $region29: #{tpu_custom_call.1} parent=11 // pred_check
          %p230 = pneg %p151
        $region30: #{tpu_custom_call.1} parent=11 // pred_check_branch
          %232 = sbr.rel (%p230) target = $region32
        $region31: #{tpu_custom_call.1} parent=11 // pred_region
          _
        $region32: #{tpu_custom_call.1} parent=11 // pred_fallthru
          _
      $region12: #{tpu_custom_call.1} parent=5 // pred_fallthru
        _
      %p233 = scmp.lt.s32.totalorder %s20, 2
      // Predicated region
      $region33: #{tpu_custom_call.1} parent=5 // pred_check
        %p234 = pneg %p233
      $region34: #{tpu_custom_call.1} parent=5 // pred_check_branch
        %236 = sbr.rel (%p234) target = $region36
      $region35: #{tpu_custom_call.1} parent=5 // pred_region
        // Predicated region
        $region37: #{tpu_custom_call.1} parent=35 // pred_check
          %p237 = pneg %p40
        $region38: #{tpu_custom_call.1} parent=35 // pred_check_branch
          %239 = sbr.rel (%p237) target = $region40
        $region39: #{tpu_custom_call.1} parent=35 // pred_region
          %p240 = scmp.lt.s32.totalorder %s20, 1
          %s241 = scalar_select %p240, %s20, 1
          %s242 = smul.addr %s241, 2
          %s243 = smul.addr %s242, 8
          %s244 = scalar_lea.vmem %s0, %s243
        $region40: #{tpu_custom_call.1} parent=35 // pred_fallthru
          _
      $region36: #{tpu_custom_call.1} parent=5 // pred_fallthru
        _
      %p245 = scmp.le.s32.totalorder 1, %s20
      %p246 = scmp.lt.s32.totalorder %s20, 3
      %p247 = pnand %p245, %p246
      %p248 = pneg %p247
      // Predicated region
      $region41: #{tpu_custom_call.1} parent=5 // pred_check
        _
      $region42: #{tpu_custom_call.1} parent=5 // pred_check_branch
        %250 = sbr.rel (%p247) target = $region44
      $region43: #{tpu_custom_call.1} parent=5 // pred_region
        %s251 = ssub.s32 %s20, 1
        %p252 = scmp.lt.s32.totalorder %s25, 1
        %s253 = scalar_select %p252, %s25, 1
        %s254 = smul.addr %s253, 2
        %s255 = smul.addr %s254, 8
        %s256 = scalar_lea.vmem %s0, %s255
        %p257 = pneg %p46
        %p258 = pneg %p43
        %p259 = pneg %p67
        %p260 = pneg %p64
        %p261 = pneg %p88
        %p262 = pneg %p85
        %p263 = pneg %p109
        %p264 = pneg %p106
        %p265 = pneg %p130
        %p266 = pneg %p127
        %p267 = pneg %p151
        %p268 = pneg %p148
        %p269 = pneg %p177
        %p270 = pneg %p174
        %s271 = sand.u32 %s164, 1
        %s272 = scalar_lea.sflag [#allocation5], %s271
        %s273 = sand.u32 %s164, 1
        %s274 = smul.addr %s273, 16
        %s275 = scalar_lea.vmem [#allocation4], %s274
        %p276 = pneg %p203
        %p277 = pneg %p200
        %s278 = sand.u32 %s190, 1
        %s279 = scalar_lea.sflag [#allocation7], %s278
        %s280 = sand.u32 %s190, 1
        %s281 = smul.addr %s280, 8
        %s282 = scalar_lea.vmem [#allocation6], %s281
        %p283 = scmp.lt.s32.totalorder %s25, 1
        %s284 = scalar_select %p283, %s25, 1
        %s285 = smul.addr %s284, 2
        %s286 = smul.addr %s285, 8
        %s287 = scalar_lea.vmem %s0, %s286
        %v289 = vld [vmem:[%s287] sm:$0xff]
        %v290 = vld [vmem:[%s287 + $0x8] sm:$0xff]
        %v291 = vlaneseq
        %vm292 = vcmp.ge.s32.totalorder %v291, 0
        %vm293 = vcmp.lt.s32.totalorder %v291, 144
        %vm294 = vmand %vm292, %vm293
        %295 = vst.msk [vmem:[#allocation2] ss:$8 sm:$0x3] %vm294, 0.0
        %296 = vst.msk [vmem:[#allocation2] ss:$8 sm:$0x0] %vm294, 0.0
        %s297 = scalar_lea.vmem [#allocation2], 33
        %298 = vst.msk [vmem:[%s297] ss:$8 sm:$0x3] %vm294, 0.0
        %299 = vst.msk [vmem:[%s297] ss:$8 sm:$0x0] %vm294, 0.0
        %vm300 = vcmask 31744
        %301 = vst.msk [vmem:[#allocation2] sm:$0xff] %vm300, 0.0
        %302 = vst.msk [vmem:[#allocation2 + $0x10] sm:$0xff] %vm300, 0.0
        %vm303 = vcmask 25600
        %304 = vst.msk [vmem:[#allocation2 + $0x20] sm:$0x3] %vm303, 0.0
        %vm305 = vcmask 589344
        %306 = vst.msk [vmem:[#allocation2] sm:$0xff] %vm305, 0.0
        %307 = vst.msk [vmem:[#allocation2 + $0x10] sm:$0xff] %vm305, 0.0
        %vm308 = vcmask 583200
        %309 = vst.msk [vmem:[#allocation2 + $0x20] sm:$0x3] %vm308, 0.0
        %vm312 = vcmask 1040384
        %v313 = vrot.slane %v289, 7
        %v314 = vrot.slane %v290, 7
        %v315 = vsel %vm312, %v313, %v314
        %316 = vrot.lane.b32.xlu0 %v313, 4
        %v317 = vpop.permute.xlu0 %316
        %318 = vrot.lane.b32.xlu0 %v315, 4
        %v319 = vpop.permute.xlu0 %318
        %320 = vrot.lane.b32.xlu0 %v314, 4
        %v321 = vpop.permute.xlu0 %320
        %vm325 = vcmask 556065
        %326 = vst.msk [vmem:[#allocation2] sm:$0xfe] %vm325, %v317
        %vm327 = vcmask 556064
        %328 = vst.msk [vmem:[#allocation2 + $0x10] sm:$0xff] %vm327, %v319
        %vm329 = vcmask 548896
        %330 = vst.msk [vmem:[#allocation2 + $0x20] sm:$0x1] %vm329, %v321
        %v331 = vld [vmem:[%s2] sm:$0x1]
        %v332 = vld [vmem:[#allocation2] sm:$0xff]
        %v333 = vld [vmem:[#allocation2 + $0x10] sm:$0xff]
        %v334 = vpack.c.bf16 %v333, %v332
        %v335 = vld [vmem:[%s1] sm:$0xf]
        %v336 = vld [vmem:[%s1 + $0x4] sm:$0xf]
        %v337 = vld [vmem:[%s1 + $0x8] sm:$0xf]
        %v338 = vld [vmem:[%s1 + $0xc] sm:$0xf]
        %v339 = vld [vmem:[%s1 + $0x10] sm:$0xf]
        %v340 = vld [vmem:[%s1 + $0x14] sm:$0xf]
        %v341 = vld [vmem:[%s1 + $0x18] sm:$0xf]
        %v342 = vld [vmem:[%s1 + $0x1c] sm:$0xf]
        %v343 = vld [vmem:[%s1 + $0x20] sm:$0xf]
        %v344 = vld [vmem:[#allocation2] sm:$0xfe]
        %v345 = vld [vmem:[#allocation2 + $0x20] sm:$0x1]
        %v346 = vpack.c.bf16 %v333, %v344
        %v347 = vpack.c.bf16 %v345, %v345
        %s348 = scalar_lea.vmem %s1, 36
        %v349 = vld [vmem:[%s348] sm:$0xf]
        %v350 = vld [vmem:[%s348 + $0x4] sm:$0xf]
        %v351 = vld [vmem:[%s348 + $0x8] sm:$0xf]
        %v352 = vld [vmem:[%s348 + $0xc] sm:$0xf]
        %v353 = vld [vmem:[%s348 + $0x10] sm:$0xf]
        %v354 = vld [vmem:[%s348 + $0x14] sm:$0xf]
        %v355 = vld [vmem:[%s348 + $0x18] sm:$0xf]
        %v356 = vld [vmem:[%s348 + $0x1c] sm:$0xf]
        %v357 = vld [vmem:[%s348 + $0x20] sm:$0xf]
        %vm358 = vsmask.f32 7424
        %v360 = vshrl.u32 %v346, 16
        %v362 = vshll.u32 %v346, 16
        %v364 = vrot.slane %v362, 1
        %v365 = vor.u32 %v360, %v364
        %v367 = vshll.u32 %v347, 16
        %v369 = vrot.slane %v367, 1
        %v370 = vsel %vm358, %v365, %v369
        %v380 = vunpack.c.l.b16 %v349
        %v381 = vunpack.c.l.b16 %v350
        %v382 = vunpack.c.l.b16 %v351
        %v383 = vunpack.c.l.b16 %v352
        %v384 = vunpack.c.l.b16 %v353
        %v385 = vunpack.c.l.b16 %v354
        %v386 = vunpack.c.l.b16 %v355
        %v387 = vunpack.c.l.b16 %v356
        %v388 = vunpack.c.l.b16 %v357
        %v389 = vpack.c.b16 %v381, %v380
        %v390 = vpack.c.b16 %v383, %v382
        %v391 = vpack.c.b16 %v385, %v384
        %v392 = vpack.c.b16 %v387, %v386
        %v393 = vpack.c.b16 %v388, %v388
        %vm398 = vcmask 588800
        %v400 = vsel %vm398, %v370, 0
        %vm402 = vcmask 1043456
        %v404 = vsel %vm402, %v393, 0
        %406 = vmatprep.subr.bf16.mxu0 0
        %407 = vmatpush1.bf16.msra.mxu0 %v389
        %408 = vmatprep.subr.bf16.mxu0 0
        %409 = vmatpush1.bf16.msra.mxu0 %v390
        %410 = vmatprep.subr.bf16.mxu0 0
        %411 = vmatpush1.bf16.msra.mxu0 %v391
        %412 = vmatprep.subr.bf16.mxu0 0
        %413 = vmatpush1.bf16.msra.mxu0 %v392
        %414 = vmatprep.subr.bf16.mxu0 0
        %415 = vmatpush1.bf16.msra.mxu0 %v404
        %416 = vmatprep.subr.bf16.mxu0 0
        %417 = vmatpush1.bf16.msra.mxu0 0
        %418 = vmatprep.subr.bf16.mxu0 0
        %419 = vmatpush1.bf16.msra.mxu0 0
        %420 = vmatprep.subr.bf16.mxu0 0
        %421 = vmatpush1.bf16.msra.mxu0 0
        %422 = vmatprep.subr.bf16.mxu0 0
        %423 = vmatpush1.bf16.msra.mxu0 0
        %424 = vmatprep.subr.bf16.mxu0 0
        %425 = vmatpush1.bf16.msra.mxu0 0
        %426 = vmatprep.subr.bf16.mxu0 0
        %427 = vmatpush1.bf16.msra.mxu0 0
        %428 = vmatprep.subr.bf16.mxu0 0
        %429 = vmatpush1.bf16.msra.mxu0 0
        %430 = vmatprep.subr.bf16.mxu0 0
        %431 = vmatpush1.bf16.msra.mxu0 0
        %432 = vmatprep.subr.bf16.mxu0 0
        %433 = vmatpush1.bf16.msra.mxu0 0
        %434 = vmatprep.subr.bf16.mxu0 0
        %435 = vmatpush1.bf16.msra.mxu0 0
        %436 = vmatprep.subr.bf16.mxu0 0
        %437 = vmatpush1.bf16.msra.mxu0 0
        %438 = vmatprep.mubr.bf16.mxu0 0
        %439 = vmatmul.mubr.bf16.gmra.mrb[0].mxu0 %v400
        %v440 = vpop.f32.mrb[0].mxu0
        %v441 = vadd.f32 0.0, %v440
        %v442 = vpop.f32.mrb[0].mxu0
        %v443 = vpop.f32.mrb[0].mxu0
        %v444 = vadd.f32 0.0, %v443
        %v445 = vpop.f32.mrb[0].mxu0
        %446 = vdwg.mxu0
        %v456 = vunpack.c.l.b16 %v335
        %v457 = vunpack.c.l.b16 %v336
        %v458 = vunpack.c.l.b16 %v337
        %v459 = vunpack.c.l.b16 %v338
        %v460 = vunpack.c.l.b16 %v339
        %v461 = vunpack.c.l.b16 %v340
        %v462 = vunpack.c.l.b16 %v341
        %v463 = vunpack.c.l.b16 %v342
        %v464 = vunpack.c.l.b16 %v343
        %v465 = vpack.c.b16 %v457, %v456
        %v466 = vpack.c.b16 %v459, %v458
        %v467 = vpack.c.b16 %v461, %v460
        %v468 = vpack.c.b16 %v463, %v462
        %v469 = vpack.c.b16 %v464, %v464
        %v475 = vsel %vm398, %v334, 0
        %v478 = vsel %vm402, %v469, 0
        %480 = vmatprep.subr.bf16.mxu0 0
        %481 = vmatpush1.bf16.msra.mxu0 %v465
        %482 = vmatprep.subr.bf16.mxu0 0
        %483 = vmatpush1.bf16.msra.mxu0 %v466
        %484 = vmatprep.subr.bf16.mxu0 0
        %485 = vmatpush1.bf16.msra.mxu0 %v467
        %486 = vmatprep.subr.bf16.mxu0 0
        %487 = vmatpush1.bf16.msra.mxu0 %v468
        %488 = vmatprep.subr.bf16.mxu0 0
        %489 = vmatpush1.bf16.msra.mxu0 %v478
        %490 = vmatprep.subr.bf16.mxu0 0
        %491 = vmatpush1.bf16.msra.mxu0 0
        %492 = vmatprep.subr.bf16.mxu0 0
        %493 = vmatpush1.bf16.msra.mxu0 0
        %494 = vmatprep.subr.bf16.mxu0 0
        %495 = vmatpush1.bf16.msra.mxu0 0
        %496 = vmatprep.subr.bf16.mxu0 0
        %497 = vmatpush1.bf16.msra.mxu0 0
        %498 = vmatprep.subr.bf16.mxu0 0
        %499 = vmatpush1.bf16.msra.mxu0 0
        %500 = vmatprep.subr.bf16.mxu0 0
        %501 = vmatpush1.bf16.msra.mxu0 0
        %502 = vmatprep.subr.bf16.mxu0 0
        %503 = vmatpush1.bf16.msra.mxu0 0
        %504 = vmatprep.subr.bf16.mxu0 0
        %505 = vmatpush1.bf16.msra.mxu0 0
        %506 = vmatprep.subr.bf16.mxu0 0
        %507 = vmatpush1.bf16.msra.mxu0 0
        %508 = vmatprep.subr.bf16.mxu0 0
        %509 = vmatpush1.bf16.msra.mxu0 0
        %510 = vmatprep.subr.bf16.mxu0 0
        %511 = vmatpush1.bf16.msra.mxu0 0
        %512 = vmatprep.mubr.bf16.mxu0 0
        %513 = vmatmul.mubr.bf16.gmra.mrb[0].mxu0 %v475
        %v514 = vpop.f32.mrb[0].mxu0
        %v515 = vadd.f32 %v441, %v514
        %v516 = vpop.f32.mrb[0].mxu0
        %v517 = vpop.f32.mrb[0].mxu0
        %v518 = vadd.f32 %v444, %v517
        %v519 = vpop.f32.mrb[0].mxu0
        %520 = vdwg.mxu0
        %v521 = vld [vmem:[#allocation2] sm:$0xfc]
        %v522 = vld [vmem:[#allocation2 + $0x20] sm:$0x3]
        %v523 = vpack.c.bf16 %v333, %v521
        %v524 = vpack.c.bf16 %v522, %v522
        %s525 = scalar_lea.vmem %s1, 72
        %v526 = vld [vmem:[%s525] sm:$0xf]
        %v527 = vld [vmem:[%s525 + $0x4] sm:$0xf]
        %v528 = vld [vmem:[%s525 + $0x8] sm:$0xf]
        %v529 = vld [vmem:[%s525 + $0xc] sm:$0xf]
        %v530 = vld [vmem:[%s525 + $0x10] sm:$0xf]
        %v531 = vld [vmem:[%s525 + $0x14] sm:$0xf]
        %v532 = vld [vmem:[%s525 + $0x18] sm:$0xf]
        %v533 = vld [vmem:[%s525 + $0x1c] sm:$0xf]
        %v534 = vld [vmem:[%s525 + $0x20] sm:$0xf]
        %vm537 = vcmask 1046528
        %v538 = vrot.slane %v523, 1
        %v539 = vrot.slane %v524, 1
        %v540 = vsel %vm537, %v538, %v539
        %v550 = vunpack.c.l.b16 %v526
        %v551 = vunpack.c.l.b16 %v527
        %v552 = vunpack.c.l.b16 %v528
        %v553 = vunpack.c.l.b16 %v529
        %v554 = vunpack.c.l.b16 %v530
        %v555 = vunpack.c.l.b16 %v531
        %v556 = vunpack.c.l.b16 %v532
        %v557 = vunpack.c.l.b16 %v533
        %v558 = vunpack.c.l.b16 %v534
        %v559 = vpack.c.b16 %v551, %v550
        %v560 = vpack.c.b16 %v553, %v552
        %v561 = vpack.c.b16 %v555, %v554
        %v562 = vpack.c.b16 %v557, %v556
        %v563 = vpack.c.b16 %v558, %v558
        %v569 = vsel %vm398, %v540, 0
        %v572 = vsel %vm402, %v563, 0
        %574 = vmatprep.subr.bf16.mxu0 0
        %575 = vmatpush1.bf16.msra.mxu0 %v559
        %576 = vmatprep.subr.bf16.mxu0 0
        %577 = vmatpush1.bf16.msra.mxu0 %v560
        %578 = vmatprep.subr.bf16.mxu0 0
        %579 = vmatpush1.bf16.msra.mxu0 %v561
        %580 = vmatprep.subr.bf16.mxu0 0
        %581 = vmatpush1.bf16.msra.mxu0 %v562
        %582 = vmatprep.subr.bf16.mxu0 0
        %583 = vmatpush1.bf16.msra.mxu0 %v572
        %584 = vmatprep.subr.bf16.mxu0 0
        %585 = vmatpush1.bf16.msra.mxu0 0
        %586 = vmatprep.subr.bf16.mxu0 0
        %587 = vmatpush1.bf16.msra.mxu0 0
        %588 = vmatprep.subr.bf16.mxu0 0
        %589 = vmatpush1.bf16.msra.mxu0 0
        %590 = vmatprep.subr.bf16.mxu0 0
        %591 = vmatpush1.bf16.msra.mxu0 0
        %592 = vmatprep.subr.bf16.mxu0 0
        %593 = vmatpush1.bf16.msra.mxu0 0
        %594 = vmatprep.subr.bf16.mxu0 0
        %595 = vmatpush1.bf16.msra.mxu0 0
        %596 = vmatprep.subr.bf16.mxu0 0
        %597 = vmatpush1.bf16.msra.mxu0 0
        %598 = vmatprep.subr.bf16.mxu0 0
        %599 = vmatpush1.bf16.msra.mxu0 0
        %600 = vmatprep.subr.bf16.mxu0 0
        %601 = vmatpush1.bf16.msra.mxu0 0
        %602 = vmatprep.subr.bf16.mxu0 0
        %603 = vmatpush1.bf16.msra.mxu0 0
        %604 = vmatprep.subr.bf16.mxu0 0
        %605 = vmatpush1.bf16.msra.mxu0 0
        %606 = vmatprep.mubr.bf16.mxu0 0
        %607 = vmatmul.mubr.bf16.gmra.mrb[0].mxu0 %v569
        %v608 = vpop.f32.mrb[0].mxu0
        %v609 = vadd.f32 0.0, %v608
        %v610 = vpop.f32.mrb[0].mxu0
        %v611 = vpop.f32.mrb[0].mxu0
        %v612 = vadd.f32 0.0, %v611
        %v613 = vpop.f32.mrb[0].mxu0
        %614 = vdwg.mxu0
        %v615 = vadd.f32 %v515, %v609
        %v616 = vadd.f32 %v518, %v612
        %v618 = vlaneseq
        %v619 = vshrl.u32 %v618, 7
        %v620 = vsub.s32 0, %v619
        %v621 = vrot.slane %v331, %v620
        %v623 = vadd.f32 %v615, %v621
        %v624 = vadd.f32 %v616, %v621
        %v625 = vmax.f32 %v623, 0.0
        %v626 = vmax.f32 %v624, 0.0
        %627 = vst.msk [vmem:[#allocation3] ss:$8 sm:$0x3] %vm294, 0.0
        %628 = vst.msk [vmem:[#allocation3] ss:$8 sm:$0x0] %vm294, 0.0
        %s629 = scalar_lea.vmem [#allocation3], 33
        %630 = vst.msk [vmem:[%s629] ss:$8 sm:$0x3] %vm294, 0.0
        %631 = vst.msk [vmem:[%s629] ss:$8 sm:$0x0] %vm294, 0.0
        %vm632 = vcmask 64512
        %633 = vst.msk [vmem:[#allocation3] sm:$0xff] %vm632, 0.0
        %634 = vst.msk [vmem:[#allocation3 + $0x10] sm:$0xff] %vm632, 0.0
        %vm635 = vcmask 58368
        %636 = vst.msk [vmem:[#allocation3 + $0x20] sm:$0x3] %vm635, 0.0
        %vm637 = vcmask 130112
        %638 = vst.msk [vmem:[#allocation3 + $0x8] sm:$0xff] %vm637, 0.0
        %639 = vst.msk [vmem:[#allocation3 + $0x18] sm:$0xff] %vm637, 0.0
        %vm640 = vcmask 123968
        %641 = vst.msk [vmem:[#allocation3 + $0x28] sm:$0x3] %vm640, 0.0
        %v644 = vrot.slane %v625, 7
        %v645 = vrot.slane %v626, 7
        %v646 = vsel %vm312, %v644, %v645
        %647 = vrot.lane.b32.xlu0 %v644, 8
        %v648 = vpop.permute.xlu0 %647
        %649 = vrot.lane.b32.xlu0 %v646, 8
        %v650 = vpop.permute.xlu0 %649
        %651 = vrot.lane.b32.xlu0 %v645, 8
        %v652 = vpop.permute.xlu0 %651
        %vm656 = vcmask 1047617
        %657 = vst.msk [vmem:[#allocation3] sm:$0xfe] %vm656, %v648
        %vm658 = vcmask 64513
        %659 = vst.msk [vmem:[#allocation3 + $0x8] sm:$0xfe] %vm658, %v648
        %vm660 = vcmask 1047616
        %661 = vst.msk [vmem:[#allocation3 + $0x10] sm:$0xff] %vm660, %v650
        %662 = vst.msk [vmem:[#allocation3 + $0x18] sm:$0xff] %vm632, %v650
        %vm663 = vcmask 1040448
        %664 = vst.msk [vmem:[#allocation3 + $0x20] sm:$0x1] %vm663, %v652
        %vm665 = vcmask 57344
        %666 = vst.msk [vmem:[#allocation3 + $0x28] sm:$0x1] %vm665, %v652
        %v667 = vld [vmem:[%s4] sm:$0x1]
        %v668 = vld [vmem:[#allocation3] sm:$0xff]
        %v669 = vld [vmem:[#allocation3 + $0x8] sm:$0xff]
        %v670 = vld [vmem:[#allocation3 + $0x10] sm:$0xff]
        %v671 = vld [vmem:[#allocation3 + $0x18] sm:$0xff]
        %v672 = vpack.c.bf16 %v670, %v668
        %v673 = vpack.c.bf16 %v671, %v669
        %v674 = vld [vmem:[%s3] sm:$0xf]
        %v675 = vld [vmem:[%s3 + $0x4] sm:$0xf]
        %v676 = vld [vmem:[%s3 + $0x8] sm:$0xf]
        %v677 = vld [vmem:[%s3 + $0xc] sm:$0xf]
        %v678 = vld [vmem:[%s3 + $0x10] sm:$0xf]
        %v679 = vld [vmem:[%s3 + $0x14] sm:$0xf]
        %v680 = vld [vmem:[%s3 + $0x18] sm:$0xf]
        %v681 = vld [vmem:[%s3 + $0x1c] sm:$0xf]
        %v682 = vld [vmem:[%s3 + $0x20] sm:$0xf]
        %v683 = vld [vmem:[%s3 + $0x24] sm:$0xf]
        %v684 = vld [vmem:[%s3 + $0x28] sm:$0xf]
        %v685 = vld [vmem:[%s3 + $0x2c] sm:$0xf]
        %v686 = vld [vmem:[%s3 + $0x30] sm:$0xf]
        %v687 = vld [vmem:[%s3 + $0x34] sm:$0xf]
        %v688 = vld [vmem:[%s3 + $0x38] sm:$0xf]
        %v689 = vld [vmem:[%s3 + $0x3c] sm:$0xf]
        %v690 = vld [vmem:[%s3 + $0x40] sm:$0xf]
        %v691 = vld [vmem:[%s3 + $0x44] sm:$0xf]
        %v692 = vld [vmem:[#allocation3] sm:$0xfe]
        %v693 = vld [vmem:[#allocation3 + $0x8] sm:$0xfe]
        %v694 = vld [vmem:[#allocation3 + $0x20] sm:$0x1]
        %v695 = vld [vmem:[#allocation3 + $0x28] sm:$0x1]
        %v696 = vpack.c.bf16 %v670, %v692
        %v697 = vpack.c.bf16 %v671, %v693
        %v698 = vpack.c.bf16 %v694, %v694
        %v699 = vpack.c.bf16 %v695, %v695
        %s700 = scalar_lea.vmem %s3, 72
        %v701 = vld [vmem:[%s700] sm:$0xf]
        %v702 = vld [vmem:[%s700 + $0x4] sm:$0xf]
        %v703 = vld [vmem:[%s700 + $0x8] sm:$0xf]
        %v704 = vld [vmem:[%s700 + $0xc] sm:$0xf]
        %v705 = vld [vmem:[%s700 + $0x10] sm:$0xf]
        %v706 = vld [vmem:[%s700 + $0x14] sm:$0xf]
        %v707 = vld [vmem:[%s700 + $0x18] sm:$0xf]
        %v708 = vld [vmem:[%s700 + $0x1c] sm:$0xf]
        %v709 = vld [vmem:[%s700 + $0x20] sm:$0xf]
        %v710 = vld [vmem:[%s700 + $0x24] sm:$0xf]
        %v711 = vld [vmem:[%s700 + $0x28] sm:$0xf]
        %v712 = vld [vmem:[%s700 + $0x2c] sm:$0xf]
        %v713 = vld [vmem:[%s700 + $0x30] sm:$0xf]
        %v714 = vld [vmem:[%s700 + $0x34] sm:$0xf]
        %v715 = vld [vmem:[%s700 + $0x38] sm:$0xf]
        %v716 = vld [vmem:[%s700 + $0x3c] sm:$0xf]
        %v717 = vld [vmem:[%s700 + $0x40] sm:$0xf]
        %v718 = vld [vmem:[%s700 + $0x44] sm:$0xf]
        %v720 = vshrl.u32 %v696, 16
        %v722 = vshll.u32 %v696, 16
        %v724 = vrot.slane %v722, 1
        %v725 = vor.u32 %v720, %v724
        %v727 = vshll.u32 %v698, 16
        %v729 = vrot.slane %v727, 1
        %v730 = vsel %vm358, %v725, %v729
        %v732 = vshrl.u32 %v697, 16
        %v734 = vshll.u32 %v697, 16
        %v736 = vrot.slane %v734, 1
        %v737 = vor.u32 %v732, %v736
        %v739 = vshll.u32 %v699, 16
        %v741 = vrot.slane %v739, 1
        %v742 = vsel %vm358, %v737, %v741
        %v762 = vunpack.c.l.b16 %v701
        %v763 = vunpack.c.l.b16 %v702
        %v764 = vunpack.c.l.b16 %v703
        %v765 = vunpack.c.l.b16 %v704
        %v766 = vunpack.c.l.b16 %v705
        %v767 = vunpack.c.l.b16 %v706
        %v768 = vunpack.c.l.b16 %v707
        %v769 = vunpack.c.l.b16 %v708
        %v770 = vunpack.c.l.b16 %v709
        %v771 = vunpack.c.l.b16 %v710
        %v772 = vunpack.c.l.b16 %v711
        %v773 = vunpack.c.l.b16 %v712
        %v774 = vunpack.c.l.b16 %v713
        %v775 = vunpack.c.l.b16 %v714
        %v776 = vunpack.c.l.b16 %v715
        %v777 = vunpack.c.l.b16 %v716
        %v778 = vunpack.c.l.b16 %v717
        %v779 = vunpack.c.l.b16 %v718
        %v780 = vpack.c.b16 %v763, %v762
        %v781 = vpack.c.b16 %v765, %v764
        %v782 = vpack.c.b16 %v767, %v766
        %v783 = vpack.c.b16 %v769, %v768
        %v784 = vpack.c.b16 %v771, %v770
        %v785 = vpack.c.b16 %v773, %v772
        %v786 = vpack.c.b16 %v775, %v774
        %v787 = vpack.c.b16 %v777, %v776
        %v788 = vpack.c.b16 %v779, %v778
        %vm798 = vcmask 130048
        %v800 = vsel %vm798, %v742, 0
        %802 = vmatprep.subr.bf16.mxu0 0
        %803 = vmatpush1.bf16.msra.mxu0 %v780
        %804 = vmatprep.subr.bf16.mxu0 0
        %805 = vmatpush1.bf16.msra.mxu0 %v781
        %806 = vmatprep.subr.bf16.mxu0 0
        %807 = vmatpush1.bf16.msra.mxu0 %v782
        %808 = vmatprep.subr.bf16.mxu0 0
        %809 = vmatpush1.bf16.msra.mxu0 %v783
        %810 = vmatprep.subr.bf16.mxu0 0
        %811 = vmatpush1.bf16.msra.mxu0 %v784
        %812 = vmatprep.subr.bf16.mxu0 0
        %813 = vmatpush1.bf16.msra.mxu0 %v785
        %814 = vmatprep.subr.bf16.mxu0 0
        %815 = vmatpush1.bf16.msra.mxu0 %v786
        %816 = vmatprep.subr.bf16.mxu0 0
        %817 = vmatpush1.bf16.msra.mxu0 %v787
        %818 = vmatprep.subr.bf16.mxu0 0
        %819 = vmatpush1.bf16.msra.mxu0 %v788
        %820 = vmatprep.subr.bf16.mxu0 0
        %821 = vmatpush1.bf16.msra.mxu0 0
        %822 = vmatprep.subr.bf16.mxu0 0
        %823 = vmatpush1.bf16.msra.mxu0 0
        %824 = vmatprep.subr.bf16.mxu0 0
        %825 = vmatpush1.bf16.msra.mxu0 0
        %826 = vmatprep.subr.bf16.mxu0 0
        %827 = vmatpush1.bf16.msra.mxu0 0
        %828 = vmatprep.subr.bf16.mxu0 0
        %829 = vmatpush1.bf16.msra.mxu0 0
        %830 = vmatprep.subr.bf16.mxu0 0
        %831 = vmatpush1.bf16.msra.mxu0 0
        %832 = vmatprep.subr.bf16.mxu0 0
        %833 = vmatpush1.bf16.msra.mxu0 0
        %834 = vmatprep.mubr.bf16.mxu0 %v800
        %835 = vmatmul.mubr.bf16.gmra.mrb[0].mxu0 %v730
        %v836 = vpop.f32.mrb[0].mxu0
        %v837 = vadd.f32 0.0, %v836
        %v838 = vpop.f32.mrb[0].mxu0
        %v839 = vpop.f32.mrb[0].mxu0
        %v840 = vadd.f32 0.0, %v839
        %v841 = vpop.f32.mrb[0].mxu0
        %842 = vdwg.mxu0
        %v861 = vunpack.c.l.b16 %v674
        %v862 = vunpack.c.l.b16 %v675
        %v863 = vunpack.c.l.b16 %v676
        %v864 = vunpack.c.l.b16 %v677
        %v865 = vunpack.c.l.b16 %v678
        %v866 = vunpack.c.l.b16 %v679
        %v867 = vunpack.c.l.b16 %v680
        %v868 = vunpack.c.l.b16 %v681
        %v869 = vunpack.c.l.b16 %v682
        %v870 = vunpack.c.l.b16 %v683
        %v871 = vunpack.c.l.b16 %v684
        %v872 = vunpack.c.l.b16 %v685
        %v873 = vunpack.c.l.b16 %v686
        %v874 = vunpack.c.l.b16 %v687
        %v875 = vunpack.c.l.b16 %v688
        %v876 = vunpack.c.l.b16 %v689
        %v877 = vunpack.c.l.b16 %v690
        %v878 = vunpack.c.l.b16 %v691
        %v879 = vpack.c.b16 %v862, %v861
        %v880 = vpack.c.b16 %v864, %v863
        %v881 = vpack.c.b16 %v866, %v865
        %v882 = vpack.c.b16 %v868, %v867
        %v883 = vpack.c.b16 %v870, %v869
        %v884 = vpack.c.b16 %v872, %v871
        %v885 = vpack.c.b16 %v874, %v873
        %v886 = vpack.c.b16 %v876, %v875
        %v887 = vpack.c.b16 %v878, %v877
        %v898 = vsel %vm798, %v673, 0
        %900 = vmatprep.subr.bf16.mxu0 0
        %901 = vmatpush1.bf16.msra.mxu0 %v879
        %902 = vmatprep.subr.bf16.mxu0 0
        %903 = vmatpush1.bf16.msra.mxu0 %v880
        %904 = vmatprep.subr.bf16.mxu0 0
        %905 = vmatpush1.bf16.msra.mxu0 %v881
        %906 = vmatprep.subr.bf16.mxu0 0
        %907 = vmatpush1.bf16.msra.mxu0 %v882
        %908 = vmatprep.subr.bf16.mxu0 0
        %909 = vmatpush1.bf16.msra.mxu0 %v883
        %910 = vmatprep.subr.bf16.mxu0 0
        %911 = vmatpush1.bf16.msra.mxu0 %v884
        %912 = vmatprep.subr.bf16.mxu0 0
        %913 = vmatpush1.bf16.msra.mxu0 %v885
        %914 = vmatprep.subr.bf16.mxu0 0
        %915 = vmatpush1.bf16.msra.mxu0 %v886
        %916 = vmatprep.subr.bf16.mxu0 0
        %917 = vmatpush1.bf16.msra.mxu0 %v887
        %918 = vmatprep.subr.bf16.mxu0 0
        %919 = vmatpush1.bf16.msra.mxu0 0
        %920 = vmatprep.subr.bf16.mxu0 0
        %921 = vmatpush1.bf16.msra.mxu0 0
        %922 = vmatprep.subr.bf16.mxu0 0
        %923 = vmatpush1.bf16.msra.mxu0 0
        %924 = vmatprep.subr.bf16.mxu0 0
        %925 = vmatpush1.bf16.msra.mxu0 0
        %926 = vmatprep.subr.bf16.mxu0 0
        %927 = vmatpush1.bf16.msra.mxu0 0
        %928 = vmatprep.subr.bf16.mxu0 0
        %929 = vmatpush1.bf16.msra.mxu0 0
        %930 = vmatprep.subr.bf16.mxu0 0
        %931 = vmatpush1.bf16.msra.mxu0 0
        %932 = vmatprep.mubr.bf16.mxu0 %v898
        %933 = vmatmul.mubr.bf16.gmra.mrb[0].mxu0 %v672
        %v934 = vpop.f32.mrb[0].mxu0
        %v935 = vadd.f32 %v837, %v934
        %v936 = vpop.f32.mrb[0].mxu0
        %v937 = vpop.f32.mrb[0].mxu0
        %v938 = vadd.f32 %v840, %v937
        %v939 = vpop.f32.mrb[0].mxu0
        %940 = vdwg.mxu0
        %v941 = vld [vmem:[#allocation3] sm:$0xfc]
        %v942 = vld [vmem:[#allocation3 + $0x8] sm:$0xfc]
        %v943 = vld [vmem:[#allocation3 + $0x20] sm:$0x3]
        %v944 = vld [vmem:[#allocation3 + $0x28] sm:$0x3]
        %v945 = vpack.c.bf16 %v670, %v941
        %v946 = vpack.c.bf16 %v671, %v942
        %v947 = vpack.c.bf16 %v943, %v943
        %v948 = vpack.c.bf16 %v944, %v944
        %s949 = scalar_lea.vmem %s3, 144
        %v950 = vld [vmem:[%s949] sm:$0xf]
        %v951 = vld [vmem:[%s949 + $0x4] sm:$0xf]
        %v952 = vld [vmem:[%s949 + $0x8] sm:$0xf]
        %v953 = vld [vmem:[%s949 + $0xc] sm:$0xf]
        %v954 = vld [vmem:[%s949 + $0x10] sm:$0xf]
        %v955 = vld [vmem:[%s949 + $0x14] sm:$0xf]
        %v956 = vld [vmem:[%s949 + $0x18] sm:$0xf]
        %v957 = vld [vmem:[%s949 + $0x1c] sm:$0xf]
        %v958 = vld [vmem:[%s949 + $0x20] sm:$0xf]
        %v959 = vld [vmem:[%s949 + $0x24] sm:$0xf]
        %v960 = vld [vmem:[%s949 + $0x28] sm:$0xf]
        %v961 = vld [vmem:[%s949 + $0x2c] sm:$0xf]
        %v962 = vld [vmem:[%s949 + $0x30] sm:$0xf]
        %v963 = vld [vmem:[%s949 + $0x34] sm:$0xf]
        %v964 = vld [vmem:[%s949 + $0x38] sm:$0xf]
        %v965 = vld [vmem:[%s949 + $0x3c] sm:$0xf]
        %v966 = vld [vmem:[%s949 + $0x40] sm:$0xf]
        %v967 = vld [vmem:[%s949 + $0x44] sm:$0xf]
        %v972 = vrot.slane %v945, 1
        %v973 = vrot.slane %v947, 1
        %v974 = vsel %vm537, %v972, %v973
        %v975 = vrot.slane %v946, 1
        %v976 = vrot.slane %v948, 1
        %v977 = vsel %vm537, %v975, %v976
        %v997 = vunpack.c.l.b16 %v950
        %v998 = vunpack.c.l.b16 %v951
        %v999 = vunpack.c.l.b16 %v952
        %v1000 = vunpack.c.l.b16 %v953
        %v1001 = vunpack.c.l.b16 %v954
        %v1002 = vunpack.c.l.b16 %v955
        %v1003 = vunpack.c.l.b16 %v956
        %v1004 = vunpack.c.l.b16 %v957
        %v1005 = vunpack.c.l.b16 %v958
        %v1006 = vunpack.c.l.b16 %v959
        %v1007 = vunpack.c.l.b16 %v960
        %v1008 = vunpack.c.l.b16 %v961
        %v1009 = vunpack.c.l.b16 %v962
        %v1010 = vunpack.c.l.b16 %v963
        %v1011 = vunpack.c.l.b16 %v964
        %v1012 = vunpack.c.l.b16 %v965
        %v1013 = vunpack.c.l.b16 %v966
        %v1014 = vunpack.c.l.b16 %v967
        %v1015 = vpack.c.b16 %v998, %v997
        %v1016 = vpack.c.b16 %v1000, %v999
        %v1017 = vpack.c.b16 %v1002, %v1001
        %v1018 = vpack.c.b16 %v1004, %v1003
        %v1019 = vpack.c.b16 %v1006, %v1005
        %v1020 = vpack.c.b16 %v1008, %v1007
        %v1021 = vpack.c.b16 %v1010, %v1009
        %v1022 = vpack.c.b16 %v1012, %v1011
        %v1023 = vpack.c.b16 %v1014, %v1013
        %v1034 = vsel %vm798, %v977, 0
        %1036 = vmatprep.subr.bf16.mxu0 0
        %1037 = vmatpush1.bf16.msra.mxu0 %v1015
        %1038 = vmatprep.subr.bf16.mxu0 0
        %1039 = vmatpush1.bf16.msra.mxu0 %v1016
        %1040 = vmatprep.subr.bf16.mxu0 0
        %1041 = vmatpush1.bf16.msra.mxu0 %v1017
        %1042 = vmatprep.subr.bf16.mxu0 0
        %1043 = vmatpush1.bf16.msra.mxu0 %v1018
        %1044 = vmatprep.subr.bf16.mxu0 0
        %1045 = vmatpush1.bf16.msra.mxu0 %v1019
        %1046 = vmatprep.subr.bf16.mxu0 0
        %1047 = vmatpush1.bf16.msra.mxu0 %v1020
        %1048 = vmatprep.subr.bf16.mxu0 0
        %1049 = vmatpush1.bf16.msra.mxu0 %v1021
        %1050 = vmatprep.subr.bf16.mxu0 0
        %1051 = vmatpush1.bf16.msra.mxu0 %v1022
        %1052 = vmatprep.subr.bf16.mxu0 0
        %1053 = vmatpush1.bf16.msra.mxu0 %v1023
        %1054 = vmatprep.subr.bf16.mxu0 0
        %1055 = vmatpush1.bf16.msra.mxu0 0
        %1056 = vmatprep.subr.bf16.mxu0 0
        %1057 = vmatpush1.bf16.msra.mxu0 0
        %1058 = vmatprep.subr.bf16.mxu0 0
        %1059 = vmatpush1.bf16.msra.mxu0 0
        %1060 = vmatprep.subr.bf16.mxu0 0
        %1061 = vmatpush1.bf16.msra.mxu0 0
        %1062 = vmatprep.subr.bf16.mxu0 0
        %1063 = vmatpush1.bf16.msra.mxu0 0
        %1064 = vmatprep.subr.bf16.mxu0 0
        %1065 = vmatpush1.bf16.msra.mxu0 0
        %1066 = vmatprep.subr.bf16.mxu0 0
        %1067 = vmatpush1.bf16.msra.mxu0 0
        %1068 = vmatprep.mubr.bf16.mxu0 %v1034
        %1069 = vmatmul.mubr.bf16.gmra.mrb[0].mxu0 %v974
        %v1070 = vpop.f32.mrb[0].mxu0
        %v1071 = vadd.f32 0.0, %v1070
        %v1072 = vpop.f32.mrb[0].mxu0
        %v1073 = vpop.f32.mrb[0].mxu0
        %v1074 = vadd.f32 0.0, %v1073
        %v1075 = vpop.f32.mrb[0].mxu0
        %1076 = vdwg.mxu0
        %v1077 = vadd.f32 %v935, %v1071
        %v1078 = vadd.f32 %v938, %v1074
        %v1080 = vlaneseq
        %v1081 = vshrl.u32 %v1080, 7
        %v1082 = vsub.s32 0, %v1081
        %v1083 = vrot.slane %v667, %v1082
        %v1085 = vadd.f32 %v1077, %v1083
        %v1086 = vadd.f32 %v1078, %v1083
        %v1087 = vmax.f32 %v1085, 0.0
        %v1088 = vmax.f32 %v1086, 0.0
        %1089 = vst [vmem:[%s275] sm:$0xff] %v1087
        %1090 = vst [vmem:[%s275 + $0x8] sm:$0xff] %v1088
        %v1093 = vcombine.high %v1087, %v1087
        %v1095 = vunpack.c.l.s4 1983009808
        %v1096 = vunpack.c.0.s8 %v1095
        %v1097 = vlaneseq
        %v1098 = vshrl.u32 %v1097, 7
        %v1099 = vsub.s32 %v1096, %v1098
        %v1100 = vrot.slane %v1087, %v1099
        %v1102 = vunpack.c.l.s4 1983009808
        %v1103 = vunpack.c.0.s8 %v1102
        %v1104 = vlaneseq
        %v1105 = vshrl.u32 %v1104, 7
        %v1106 = vsub.s32 %v1103, %v1105
        %v1107 = vrot.slane %v1093, %v1106
        %v1108 = vcombine.high %v1100, %v1100
        %v1109 = vcombine.high %v1107, %v1107
        %v1110 = vcombine.high %v1088, %v1088
        %v1112 = vunpack.c.l.s4 1983009808
        %v1113 = vunpack.c.0.s8 %v1112
        %v1114 = vlaneseq
        %v1115 = vshrl.u32 %v1114, 7
        %v1116 = vsub.s32 %v1113, %v1115
        %v1117 = vrot.slane %v1088, %v1116
        %v1119 = vunpack.c.l.s4 1983009808
        %v1120 = vunpack.c.0.s8 %v1119
        %v1121 = vlaneseq
        %v1122 = vshrl.u32 %v1121, 7
        %v1123 = vsub.s32 %v1120, %v1122
        %v1124 = vrot.slane %v1110, %v1123
        %v1125 = vcombine.high %v1117, %v1117
        %v1126 = vcombine.high %v1124, %v1124
        %v1135 = vrot.slane %v1100, 7
        %v1136 = vrot.slane %v1135, 2
        %v1137 = vrot.slane %v1108, 7
        %v1138 = vrot.slane %v1137, 2
        %v1139 = vrot.slane %v1107, 7
        %v1140 = vrot.slane %v1139, 2
        %v1141 = vrot.slane %v1109, 7
        %v1142 = vrot.slane %v1141, 2
        %v1143 = vrot.slane %v1117, 7
        %v1144 = vrot.slane %v1143, 2
        %v1145 = vrot.slane %v1125, 7
        %v1146 = vrot.slane %v1145, 2
        %v1147 = vrot.slane %v1124, 7
        %v1148 = vrot.slane %v1147, 2
        %v1149 = vrot.slane %v1126, 7
        %v1150 = vrot.slane %v1149, 2
        %v1159 = vmax.f32 %v1100, %v1136
        %v1160 = vmax.f32 %v1108, %v1138
        %v1161 = vmax.f32 %v1107, %v1140
        %v1162 = vmax.f32 %v1109, %v1142
        %v1163 = vmax.f32 %v1117, %v1144
        %v1164 = vmax.f32 %v1125, %v1146
        %v1165 = vmax.f32 %v1124, %v1148
        %v1166 = vmax.f32 %v1126, %v1150
        %v1167 = vld [vmem:[%s5] sm:$0xff]
        %v1168 = vld [vmem:[%s5 + $0x8] sm:$0xff]
        %v1169 = vld [vmem:[%s5 + $0x10] sm:$0xff]
        %v1170 = vld [vmem:[%s5 + $0x18] sm:$0xff]
        %v1171 = vld [vmem:[%s5 + $0x20] sm:$0xff]
        %v1172 = vld [vmem:[%s5 + $0x28] sm:$0xff]
        %v1173 = vld [vmem:[%s5 + $0x30] sm:$0xff]
        %v1174 = vld [vmem:[%s5 + $0x38] sm:$0xff]
        %v1175 = vld [vmem:[%s5 + $0x40] sm:$0xff]
        %v1176 = vld [vmem:[%s5 + $0x48] sm:$0xff]
        %v1177 = vld [vmem:[%s5 + $0x50] sm:$0xff]
        %v1178 = vld [vmem:[%s5 + $0x58] sm:$0xff]
        %v1179 = vld [vmem:[%s5 + $0x60] sm:$0xff]
        %v1180 = vld [vmem:[%s5 + $0x68] sm:$0xff]
        %v1181 = vld [vmem:[%s5 + $0x70] sm:$0xff]
        %v1182 = vld [vmem:[%s5 + $0x78] sm:$0xff]
        %v1191 = vlaneseq
        %v1192 = vshrl.u32 %v1191, 7
        %v1193 = vsub.s32 0, %v1192
        %v1194 = vrot.slane %v1159, %v1193
        %v1195 = vlaneseq
        %v1196 = vshrl.u32 %v1195, 7
        %v1197 = vsub.s32 0, %v1196
        %v1198 = vrot.slane %v1160, %v1197
        %v1199 = vlaneseq
        %v1200 = vshrl.u32 %v1199, 7
        %v1201 = vsub.s32 0, %v1200
        %v1202 = vrot.slane %v1161, %v1201
        %v1203 = vlaneseq
        %v1204 = vshrl.u32 %v1203, 7
        %v1205 = vsub.s32 0, %v1204
        %v1206 = vrot.slane %v1162, %v1205
        %v1207 = vlaneseq
        %v1208 = vshrl.u32 %v1207, 7
        %v1209 = vsub.s32 0, %v1208
        %v1210 = vrot.slane %v1163, %v1209
        %v1211 = vlaneseq
        %v1212 = vshrl.u32 %v1211, 7
        %v1213 = vsub.s32 0, %v1212
        %v1214 = vrot.slane %v1164, %v1213
        %v1215 = vlaneseq
        %v1216 = vshrl.u32 %v1215, 7
        %v1217 = vsub.s32 0, %v1216
        %v1218 = vrot.slane %v1165, %v1217
        %v1219 = vlaneseq
        %v1220 = vshrl.u32 %v1219, 7
        %v1221 = vsub.s32 0, %v1220
        %v1222 = vrot.slane %v1166, %v1221
        %vm1223 = vcmask 1041409
        %v1224 = vsel %vm1223, %v1198, %v1194
        %vm1225 = vcmask 1042434
        %v1226 = vsel %vm1225, %v1202, %v1224
        %vm1227 = vcmask 1043459
        %v1228 = vsel %vm1227, %v1206, %v1226
        %vm1229 = vcmask 1044484
        %v1230 = vsel %vm1229, %v1210, %v1228
        %vm1231 = vcmask 1045509
        %v1232 = vsel %vm1231, %v1214, %v1230
        %vm1233 = vcmask 1046534
        %v1234 = vsel %vm1233, %v1218, %v1232
        %vm1235 = vcmask 1047559
        %v1236 = vsel %vm1235, %v1222, %v1234
        %1238 = vmatprep.subr.mxu0 0.0
        %1239 = vmatpush1.msra.mxu0 %v1167
        %1240 = vmatprep.subr.mxu0 0.0
        %1241 = vmatpush1.msra.mxu0 %v1168
        %1242 = vmatprep.subr.mxu0 0.0
        %1243 = vmatpush1.msra.mxu0 %v1169
        %1244 = vmatprep.subr.mxu0 0.0
        %1245 = vmatpush1.msra.mxu0 %v1170
        %1246 = vmatprep.subr.mxu0 0.0
        %1247 = vmatpush1.msra.mxu0 %v1171
        %1248 = vmatprep.subr.mxu0 0.0
        %1249 = vmatpush1.msra.mxu0 %v1172
        %1250 = vmatprep.subr.mxu0 0.0
        %1251 = vmatpush1.msra.mxu0 %v1173
        %1252 = vmatprep.subr.mxu0 0.0
        %1253 = vmatpush1.msra.mxu0 %v1174
        %1254 = vmatprep.subr.mxu0 0.0
        %1255 = vmatpush1.msra.mxu0 %v1175
        %1256 = vmatprep.subr.mxu0 0.0
        %1257 = vmatpush1.msra.mxu0 %v1176
        %1258 = vmatprep.subr.mxu0 0.0
        %1259 = vmatpush1.msra.mxu0 %v1177
        %1260 = vmatprep.subr.mxu0 0.0
        %1261 = vmatpush1.msra.mxu0 %v1178
        %1262 = vmatprep.subr.mxu0 0.0
        %1263 = vmatpush1.msra.mxu0 %v1179
        %1264 = vmatprep.subr.mxu0 0.0
        %1265 = vmatpush1.msra.mxu0 %v1180
        %1266 = vmatprep.subr.mxu0 0.0
        %1267 = vmatpush1.msra.mxu0 %v1181
        %1268 = vmatprep.subr.mxu0 0.0
        %1269 = vmatpush1.msra.mxu0 %v1182
        %1270 = vmatprep.subr.mxu0 0.0
        %1271 = vmatpush1.msra.mxu0 0.0
        %1272 = vmatprep.subr.mxu0 0.0
        %1273 = vmatpush1.msra.mxu0 0.0
        %1274 = vmatprep.subr.mxu0 0.0
        %1275 = vmatpush1.msra.mxu0 0.0
        %1276 = vmatprep.subr.mxu0 0.0
        %1277 = vmatpush1.msra.mxu0 0.0
        %1278 = vmatprep.subr.mxu0 0.0
        %1279 = vmatpush1.msra.mxu0 0.0
        %1280 = vmatprep.subr.mxu0 0.0
        %1281 = vmatpush1.msra.mxu0 0.0
        %1282 = vmatprep.subr.mxu0 0.0
        %1283 = vmatpush1.msra.mxu0 0.0
        %1284 = vmatprep.subr.mxu0 0.0
        %1285 = vmatpush1.msra.mxu0 0.0
        %1286 = vmatprep.subr.mxu0 0.0
        %1287 = vmatpush1.msra.mxu0 0.0
        %1288 = vmatprep.subr.mxu0 0.0
        %1289 = vmatpush1.msra.mxu0 0.0
        %1290 = vmatprep.subr.mxu0 0.0
        %1291 = vmatpush1.msra.mxu0 0.0
        %1292 = vmatprep.subr.mxu0 0.0
        %1293 = vmatpush1.msra.mxu0 0.0
        %1294 = vmatprep.subr.mxu0 0.0
        %1295 = vmatpush1.msra.mxu0 0.0
        %1296 = vmatprep.subr.mxu0 0.0
        %1297 = vmatpush1.msra.mxu0 0.0
        %1298 = vmatprep.subr.mxu0 0.0
        %1299 = vmatpush1.msra.mxu0 0.0
        %1300 = vmatprep.subr.mxu0 0.0
        %1301 = vmatpush1.msra.mxu0 0.0
        %1302 = vmatprep.mubr.f32.mxu0 0.0
        %1303 = vmatmul.mubr.f32.gmra.mrb[0].mxu0 %v1236
        %v1304 = vpop.f32.mrb[0].mxu0
        %v1305 = vadd.f32 0.0, %v1304
        %v1306 = vpop.f32.mrb[0].mxu0
        %1307 = vdwg.mxu0
        %s1308 = scalar_lea.vmem %s5, 128
        %v1309 = vld [vmem:[%s1308] sm:$0xff]
        %v1310 = vld [vmem:[%s1308 + $0x8] sm:$0xff]
        %v1311 = vld [vmem:[%s1308 + $0x10] sm:$0xff]
        %v1312 = vld [vmem:[%s1308 + $0x18] sm:$0xff]
        %v1313 = vld [vmem:[%s1308 + $0x20] sm:$0xff]
        %v1314 = vld [vmem:[%s1308 + $0x28] sm:$0xff]
        %v1315 = vld [vmem:[%s1308 + $0x30] sm:$0xff]
        %v1316 = vld [vmem:[%s1308 + $0x38] sm:$0xff]
        %v1317 = vld [vmem:[%s1308 + $0x40] sm:$0xff]
        %v1318 = vld [vmem:[%s1308 + $0x48] sm:$0xff]
        %v1319 = vld [vmem:[%s1308 + $0x50] sm:$0xff]
        %v1320 = vld [vmem:[%s1308 + $0x58] sm:$0xff]
        %v1321 = vld [vmem:[%s1308 + $0x60] sm:$0xff]
        %v1322 = vld [vmem:[%s1308 + $0x68] sm:$0xff]
        %v1323 = vld [vmem:[%s1308 + $0x70] sm:$0xff]
        %v1324 = vld [vmem:[%s1308 + $0x78] sm:$0xff]
        %1325 = vmatprep.subr.mxu0 0.0
        %1326 = vmatpush1.msra.mxu0 %v1309
        %1327 = vmatprep.subr.mxu0 0.0
        %1328 = vmatpush1.msra.mxu0 %v1310
        %1329 = vmatprep.subr.mxu0 0.0
        %1330 = vmatpush1.msra.mxu0 %v1311
        %1331 = vmatprep.subr.mxu0 0.0
        %1332 = vmatpush1.msra.mxu0 %v1312
        %1333 = vmatprep.subr.mxu0 0.0
        %1334 = vmatpush1.msra.mxu0 %v1313
        %1335 = vmatprep.subr.mxu0 0.0
        %1336 = vmatpush1.msra.mxu0 %v1314
        %1337 = vmatprep.subr.mxu0 0.0
        %1338 = vmatpush1.msra.mxu0 %v1315
        %1339 = vmatprep.subr.mxu0 0.0
        %1340 = vmatpush1.msra.mxu0 %v1316
        %1341 = vmatprep.subr.mxu0 0.0
        %1342 = vmatpush1.msra.mxu0 %v1317
        %1343 = vmatprep.subr.mxu0 0.0
        %1344 = vmatpush1.msra.mxu0 %v1318
        %1345 = vmatprep.subr.mxu0 0.0
        %1346 = vmatpush1.msra.mxu0 %v1319
        %1347 = vmatprep.subr.mxu0 0.0
        %1348 = vmatpush1.msra.mxu0 %v1320
        %1349 = vmatprep.subr.mxu0 0.0
        %1350 = vmatpush1.msra.mxu0 %v1321
        %1351 = vmatprep.subr.mxu0 0.0
        %1352 = vmatpush1.msra.mxu0 %v1322
        %1353 = vmatprep.subr.mxu0 0.0
        %1354 = vmatpush1.msra.mxu0 %v1323
        %1355 = vmatprep.subr.mxu0 0.0
        %1356 = vmatpush1.msra.mxu0 %v1324
        %1357 = vmatprep.subr.mxu0 0.0
        %1358 = vmatpush1.msra.mxu0 0.0
        %1359 = vmatprep.subr.mxu0 0.0
        %1360 = vmatpush1.msra.mxu0 0.0
        %1361 = vmatprep.subr.mxu0 0.0
        %1362 = vmatpush1.msra.mxu0 0.0
        %1363 = vmatprep.subr.mxu0 0.0
        %1364 = vmatpush1.msra.mxu0 0.0
        %1365 = vmatprep.subr.mxu0 0.0
        %1366 = vmatpush1.msra.mxu0 0.0
        %1367 = vmatprep.subr.mxu0 0.0
        %1368 = vmatpush1.msra.mxu0 0.0
        %1369 = vmatprep.subr.mxu0 0.0
        %1370 = vmatpush1.msra.mxu0 0.0
        %1371 = vmatprep.subr.mxu0 0.0
        %1372 = vmatpush1.msra.mxu0 0.0
        %1373 = vmatprep.subr.mxu0 0.0
        %1374 = vmatpush1.msra.mxu0 0.0
        %1375 = vmatprep.subr.mxu0 0.0
        %1376 = vmatpush1.msra.mxu0 0.0
        %1377 = vmatprep.subr.mxu0 0.0
        %1378 = vmatpush1.msra.mxu0 0.0
        %1379 = vmatprep.subr.mxu0 0.0
        %1380 = vmatpush1.msra.mxu0 0.0
        %1381 = vmatprep.subr.mxu0 0.0
        %1382 = vmatpush1.msra.mxu0 0.0
        %1383 = vmatprep.subr.mxu0 0.0
        %1384 = vmatpush1.msra.mxu0 0.0
        %1385 = vmatprep.subr.mxu0 0.0
        %1386 = vmatpush1.msra.mxu0 0.0
        %1387 = vmatprep.subr.mxu0 0.0
        %1388 = vmatpush1.msra.mxu0 0.0
        %1389 = vmatprep.mubr.f32.mxu0 0.0
        %1390 = vmatmul.mubr.f32.gmra.mrb[0].mxu0 %v1236
        %v1391 = vpop.f32.mrb[0].mxu0
        %v1392 = vadd.f32 0.0, %v1391
        %v1393 = vpop.f32.mrb[0].mxu0
        %1394 = vdwg.mxu0
        %v1395 = vmax.f32 %v1305, %v1392
        %vm1396 = vcmask 523264
        %1397 = vst.msk [vmem:[%s282] sm:$0xff] %vm1396, %v1395
        %s1398 = sand.u32 %s164, 1
        %s1399 = scalar_lea.sflag [#allocation5], %s1398
        %s1400 = sand.u32 %s164, 1
        %s1401 = smul.addr %s1400, 16
        %s1402 = scalar_lea.vmem [#allocation4], %s1401
        %s1403 = sand.u32 %s190, 1
        %s1404 = scalar_lea.sflag [#allocation7], %s1403
        %s1405 = sand.u32 %s190, 1
        %s1406 = smul.addr %s1405, 8
        %s1407 = scalar_lea.vmem [#allocation6], %s1406
        // Predicated region
        $region45: #{tpu_custom_call.1} parent=43 // pred_check
          %p1408 = pneg %p174
        $region46: #{tpu_custom_call.1} parent=43 // pred_check_branch
          %1410 = sbr.rel (%p1408) target = $region48
        $region47: #{tpu_custom_call.1} parent=43 // pred_region
          %s1412 = ssub.s32 256, 256
          %1413 = vsyncadd %s1399, %s1412
          %s1414 = smul.addr %s25, 2
          %s1415 = smul.addr %s1414, 128
          %s1416 = scalar_lea.hbm %s6, %s1415
          %s1417 = sshll.u32 %s1402, 4
          %s1418 = int_to_ptr.vmem [resolvable:$true] %s1417
          %1423 = dma.vmem_to_hbm [thread:$0]  %s1418, 256, %s1416, %s1399, 128, 128, 8
        $region48: #{tpu_custom_call.1} parent=43 // pred_fallthru
          _
        // Predicated region
        $region49: #{tpu_custom_call.1} parent=43 // pred_check
          %p1424 = pneg %p200
        $region50: #{tpu_custom_call.1} parent=43 // pred_check_branch
          %1426 = sbr.rel (%p1424) target = $region52
        $region51: #{tpu_custom_call.1} parent=43 // pred_region
          %s1428 = ssub.s32 128, 128
          %1429 = vsyncadd %s1404, %s1428
          %s1430 = smul.addr %s25, 128
          %s1431 = scalar_lea.hbm %s7, %s1430
          %s1433 = sshll.u32 %s1407, 4
          %s1434 = int_to_ptr.vmem [resolvable:$true] %s1433
          %1436 = dma.vmem_to_hbm [thread:$0]  %s1434, 128, %s1431, %s1404
        $region52: #{tpu_custom_call.1} parent=43 // pred_fallthru
          _
      $region44: #{tpu_custom_call.1} parent=5 // pred_fallthru
        _
      %p1437 = scmp.le.s32.totalorder 2, %s20
      // Predicated region
      $region53: #{tpu_custom_call.1} parent=5 // pred_check
        %p1438 = pneg %p1437
      $region54: #{tpu_custom_call.1} parent=5 // pred_check_branch
        %1440 = sbr.rel (%p1438) target = $region56
      $region55: #{tpu_custom_call.1} parent=5 // pred_region
        %s1441 = ssub.s32 %s20, 2
        // Predicated region
        $region57: #{tpu_custom_call.1} parent=55 // pred_check
          %p1442 = pneg %p180
        $region58: #{tpu_custom_call.1} parent=55 // pred_check_branch
          %1444 = sbr.rel (%p1442) target = $region60
        $region59: #{tpu_custom_call.1} parent=55 // pred_region
          %s1445 = sand.u32 %s165, 1
          %s1446 = scalar_lea.sflag [#allocation5], %s1445
          %s1447 = sand.u32 %s165, 1
          %s1448 = smul.addr %s1447, 16
          %s1449 = scalar_lea.vmem [#allocation4], %s1448
          %1450 = dma.done %s1446, 256
        $region60: #{tpu_custom_call.1} parent=55 // pred_fallthru
          _
        // Predicated region
        $region61: #{tpu_custom_call.1} parent=55 // pred_check
          %p1451 = pneg %p206
        $region62: #{tpu_custom_call.1} parent=55 // pred_check_branch
          %1453 = sbr.rel (%p1451) target = $region64
        $region63: #{tpu_custom_call.1} parent=55 // pred_region
          %s1454 = sand.u32 %s191, 1
          %s1455 = scalar_lea.sflag [#allocation7], %s1454
          %s1456 = sand.u32 %s191, 1
          %s1457 = smul.addr %s1456, 8
          %s1458 = scalar_lea.vmem [#allocation6], %s1457
          %1459 = dma.done %s1455, 128
        $region64: #{tpu_custom_call.1} parent=55 // pred_fallthru
          _
      $region56: #{tpu_custom_call.1} parent=5 // pred_fallthru
        _
    $region6: #{tpu_custom_call.1} parent=1 // loop_footer
      %s24 = sadd.s32 1, %s20
    $region7: #{tpu_custom_call.1} parent=1 // loop_footer_branch
      %19 = sbr.rel target = $region3
    $region8: #{tpu_custom_call.1} parent=1 // loop_exit
      _
    %1460 = vsyncpa [#allocation5], 1
    %s1461 = scalar_lea.sflag [#allocation5], 1
    %1462 = vsyncpa %s1461, 1
    %1463 = vsyncpa [#allocation7], 1
    %s1464 = scalar_lea.sflag [#allocation7], 1
    %1465 = vsyncpa %s1464, 1

</llo_original>
